<compile_context>
chip_gen: v6e
topology: v6e:2x2x1
jax: 0.10.0
libtpu: 0.0.40
codegen_flags: <defaults>
</compile_context>

<pallas_src>
import jax
import jax.numpy as jnp
from jax.experimental import pallas as pl
from jax.experimental.pallas import tpu as pltpu


_VMEM_LIMIT = 32 * 1024 * 1024  # conservative; fits v5e/v6e/v7x scoped VMEM


# ---------------------------------------------------------------------------
# Kernels
# ---------------------------------------------------------------------------

def _gcn_layer1_kernel(alpha_ref, a_ref, x_ref, w1_ref, b1_ref, w2_ref,
                       scale_ref, o_ref, acc_ref):
    """o = dropout(prelu((sum_k A[i,k] @ X[k]) @ W1 + b1)) @ W2."""
    k = pl.program_id(1)

    @pl.when(k == 0)
    def _():
        acc_ref[...] = jnp.zeros_like(acc_ref)

    # Aggregation at the narrow input width Fin.
    acc_ref[...] += jnp.dot(a_ref[...], x_ref[...],
                            preferred_element_type=jnp.float32)

    @pl.when(k == pl.num_programs(1) - 1)
    def _():
        # Narrow -> wide weight transform (W1 is VMEM-resident, ~128 KiB bf16).
        h = jnp.dot(acc_ref[...].astype(jnp.bfloat16), w1_ref[...],
                    preferred_element_type=jnp.float32)
        h = h + b1_ref[...]                              # GCNConv-1 bias
        alpha = alpha_ref[0]                             # shared PReLU slope
        h = jnp.where(h >= 0.0, h, alpha * h)
        h = h * scale_ref[...].astype(jnp.float32)       # inverted dropout {0,2}
        # Layer-2 weight transform fused here so the N x 512 activation never
        # touches HBM.
        o_ref[...] = jnp.dot(h.astype(jnp.bfloat16), w2_ref[...],
                             preferred_element_type=jnp.float32
                             ).astype(o_ref.dtype)


def _gcn_layer2_kernel(alpha_ref, a_ref, h_ref, b2_ref, scale_ref,
                       o_ref, acc_ref):
    """o = dropout(prelu(sum_k A[i,k] @ H[k] + b2))."""
    k = pl.program_id(1)

    @pl.when(k == 0)
    def _():
        acc_ref[...] = jnp.zeros_like(acc_ref)

    acc_ref[...] += jnp.dot(a_ref[...], h_ref[...],
                            preferred_element_type=jnp.float32)

    @pl.when(k == pl.num_programs(1) - 1)
    def _():
        y = acc_ref[...] + b2_ref[...]
        alpha = alpha_ref[0]
        y = jnp.where(y >= 0.0, y, alpha * y)
        o_ref[...] = (y * scale_ref[...].astype(jnp.float32)).astype(o_ref.dtype)


# ---------------------------------------------------------------------------
# pallas_call wrappers
# ---------------------------------------------------------------------------

def _tile(dim, pref):
    """Largest multiple of 128 <= pref that divides dim (dim % 128 == 0)."""
    t = max(128, min(pref, dim))
    t -= t % 128
    while dim % t:
        t -= 128
    return t


def gcn_layer1(a_hat, x, w1, b1, w2, scale, alpha, *,
               bm=512, bk=1024, out_dtype=jnp.bfloat16):
    n_p, fin_p = a_hat.shape[0], x.shape[1]
    h1, h2 = w1.shape[1], w2.shape[1]
    bm, bk = _tile(n_p, bm), _tile(n_p, bk)
    grid = (n_p // bm, n_p // bk)
    b1_2d = b1.reshape(1, h1).astype(jnp.float32)
    alpha_arr = jnp.asarray(alpha, jnp.float32).reshape(1)
    cost = pl.CostEstimate(
        flops=2 * n_p * n_p * fin_p + 2 * n_p * fin_p * h1
              + 2 * n_p * h1 * h2 + 4 * n_p * h1,
        transcendentals=0,
        bytes_accessed=2 * n_p * n_p + 2 * n_p * fin_p + 2 * fin_p * h1
                       + 2 * h1 * h2 + 2 * n_p * h1 + 4 * h1 + 2 * n_p * h2)
    return pl.pallas_call(
        _gcn_layer1_kernel,
        out_shape=jax.ShapeDtypeStruct((n_p, h2), out_dtype),
        grid_spec=pltpu.PrefetchScalarGridSpec(
            num_scalar_prefetch=0,
            grid=grid,
            in_specs=[
                pl.BlockSpec(memory_space=pltpu.MemorySpace.SMEM),   # alpha
                pl.BlockSpec((bm, bk), lambda i, k: (i, k)),         # A_hat
                pl.BlockSpec((bk, fin_p), lambda i, k: (k, 0)),      # X
                pl.BlockSpec((fin_p, h1), lambda i, k: (0, 0)),      # W1 resident
                pl.BlockSpec((1, h1), lambda i, k: (0, 0)),          # b1
                pl.BlockSpec((h1, h2), lambda i, k: (0, 0)),         # W2 resident
                pl.BlockSpec((bm, h1), lambda i, k: (i, 0)),         # drop scale
            ],
            out_specs=pl.BlockSpec((bm, h2), lambda i, k: (i, 0)),
            scratch_shapes=[pltpu.VMEM((bm, fin_p), jnp.float32)]),
        compiler_params=pltpu.CompilerParams(
            dimension_semantics=("parallel", "arbitrary"),
            vmem_limit_bytes=_VMEM_LIMIT),
        cost_estimate=cost,
    )(alpha_arr, a_hat, x, w1, b1_2d, w2, scale)


def gcn_layer2(a_hat, h, b2, scale, alpha, *,
               bm=512, bk=1024, out_dtype=jnp.float32):
    n_p, h2 = a_hat.shape[0], h.shape[1]
    bm, bk = _tile(n_p, bm), _tile(n_p, bk)
    grid = (n_p // bm, n_p // bk)
    b2_2d = b2.reshape(1, h2).astype(jnp.float32)
    alpha_arr = jnp.asarray(alpha, jnp.float32).reshape(1)
    cost = pl.CostEstimate(
        flops=2 * n_p * n_p * h2 + 4 * n_p * h2,
        transcendentals=0,
        bytes_accessed=2 * n_p * n_p + 2 * n_p * h2 + 2 * n_p * h2 + 4 * h2
                       + n_p * h2 * jnp.dtype(out_dtype).itemsize)
    return pl.pallas_call(
        _gcn_layer2_kernel,
        out_shape=jax.ShapeDtypeStruct((n_p, h2), out_dtype),
        grid_spec=pltpu.PrefetchScalarGridSpec(
            num_scalar_prefetch=0,
            grid=grid,
            in_specs=[
                pl.BlockSpec(memory_space=pltpu.MemorySpace.SMEM),   # alpha
                pl.BlockSpec((bm, bk), lambda i, k: (i, k)),         # A_hat
                pl.BlockSpec((bk, h2), lambda i, k: (k, 0)),         # H
                pl.BlockSpec((1, h2), lambda i, k: (0, 0)),          # b2
                pl.BlockSpec((bm, h2), lambda i, k: (i, 0)),         # drop scale
            ],
            out_specs=pl.BlockSpec((bm, h2), lambda i, k: (i, 0)),
            scratch_shapes=[pltpu.VMEM((bm, h2), jnp.float32)]),
        compiler_params=pltpu.CompilerParams(
            dimension_semantics=("parallel", "arbitrary"),
            vmem_limit_bytes=_VMEM_LIMIT),
        cost_estimate=cost,
    )(alpha_arr, a_hat, h, b2_2d, scale)


# ---------------------------------------------------------------------------
# Graph / model glue (plain JAX)
# ---------------------------------------------------------------------------

def _round_up(v, m=128):
    return ((v + m - 1) // m) * m


def _pad2(x, rows, cols):
    pr, pc = rows - x.shape[0], cols - x.shape[1]
    if pr == 0 and pc == 0:
        return x
    return jnp.pad(x, ((0, pr), (0, pc)))


def normalized_adjacency(edge_index, num_nodes):
    """A_hat = D^{-1/2} (A + I) D^{-1/2}, standard GCNConv normalization."""
    src, dst = edge_index[0], edge_index[1]
    a = jnp.zeros((num_nodes, num_nodes), jnp.float32)
    a = a.at[dst, src].set(1.0)                       # message src -> dst
    a = a + jnp.eye(num_nodes, dtype=jnp.float32)     # add self loops
    deg = a.sum(axis=1)
    d_inv_sqrt = jnp.where(deg > 0, 1.0 / jnp.sqrt(deg), 0.0)
    return d_inv_sqrt[:, None] * a * d_inv_sqrt[None, :]


def glorot(key, fan_in, fan_out):
    limit = (6.0 / (fan_in + fan_out)) ** 0.5
    return jax.random.uniform(
        key, (fan_in, fan_out), jnp.float32, minval=-limit, maxval=limit)


class GCNPallas:
    """Mirrors GCN(input_dim, output_dim): two GCNConv layers, h1=512, h2=128."""

    def __init__(self, input_dim, key):
        self.input_dim = input_dim
        self.h1, self.h2 = 512, 128
        k1, k2 = jax.random.split(key)
        self.w1 = glorot(k1, input_dim, self.h1)
        self.b1 = jnp.zeros((self.h1,), jnp.float32)
        self.w2 = glorot(k2, self.h1, self.h2)
        self.b2 = jnp.zeros((self.h2,), jnp.float32)
        self.prelu_alpha = jnp.float32(0.25)          # nn.PReLU() default init

    def __call__(self, x, edge_index, dropout_key):
        n, fin = x.shape
        n_p, fin_p = _round_up(n), _round_up(fin)

        # Single bf16 materialization of every MXU operand (A_hat cast exactly
        # once and reused by both aggregations).  Zero-padded rows AND columns
        # of A_hat guarantee padded-node garbage never reaches real rows.
        a_p = _pad2(normalized_adjacency(edge_index, n), n_p, n_p
                    ).astype(jnp.bfloat16)
        x_p = _pad2(x, n_p, fin_p).astype(jnp.bfloat16)
        w1_p = _pad2(self.w1, fin_p, self.h1).astype(jnp.bfloat16)
        w2_16 = self.w2.astype(jnp.bfloat16)

        # Precomputed inverted-dropout scales {0, 2.0} in bf16 (p = 0.5).
        # TODO(synk): draw in-kernel via pltpu.prng_seed/prng_random_bits keyed
        # on program_id to eliminate this HBM stream on hardware.
        k1, k2 = jax.random.split(dropout_key)
        scale1 = jax.random.bernoulli(k1, 0.5, (n_p, self.h1)
                                      ).astype(jnp.bfloat16) * jnp.bfloat16(2.0)
        scale2 = jax.random.bernoulli(k2, 0.5, (n_p, self.h2)
                                      ).astype(jnp.bfloat16) * jnp.bfloat16(2.0)

        # Fused layer 1 (+ layer-2 weight transform):
        #   H = dropout(prelu(A @ X @ W1 + b1)) @ W2
        h = gcn_layer1(a_p, x_p, w1_p, self.b1, w2_16, scale1,
                       self.prelu_alpha, out_dtype=jnp.bfloat16)

        # Fused layer-2 aggregation:  out = dropout(prelu(A @ H + b2))
        y2 = gcn_layer2(a_p, h, self.b2, scale2, self.prelu_alpha,
                        out_dtype=jnp.float32)

        return y2[:n, :]                               # strip node padding


# ---------------------------------------------------------------------------
# Smoke test
# ---------------------------------------------------------------------------

if __name__ == "__main__":
    key = jax.random.PRNGKey(0)
    k_x, k_params, k_drop = jax.random.split(key, 3)

    num_nodes = 16
    input_dim = 32

    # Node features and a small symmetric ring graph.
    x = jax.random.normal(k_x, (num_nodes, input_dim), jnp.float32)
    src = jnp.arange(num_nodes, dtype=jnp.int32)
    dst = (src + 1) % num_nodes
    edge_index = jnp.stack(
        [jnp.concatenate([src, dst]), jnp.concatenate([dst, src])], axis=0)

    model = GCNPallas(input_dim, k_params)
    out = model(x, edge_index, k_drop)
    jax.block_until_ready(out)

    assert out.shape == (num_nodes, 128)
    assert out.dtype == jnp.float32
    assert bool(jnp.all(jnp.isfinite(out)))
    print("KERNEL_OK")
</pallas_src>

<mosaic_0001>
module attributes {stable_mosaic.version = 11 : i64} {
  func.func @_gcn_layer1_kernel(%arg0: i32, %arg1: i32, %arg2: memref<1xf32, #tpu.memory_space<smem>>, %arg3: memref<128x128xbf16, #tpu.memory_space<vmem>>, %arg4: memref<128x128xbf16, #tpu.memory_space<vmem>>, %arg5: memref<128x512xbf16, #tpu.memory_space<vmem>>, %arg6: memref<1x512xf32, #tpu.memory_space<vmem>>, %arg7: memref<512x128xbf16, #tpu.memory_space<vmem>>, %arg8: memref<128x512xbf16, #tpu.memory_space<vmem>>, %arg9: memref<128x128xbf16, #tpu.memory_space<vmem>>, %arg10: memref<128x128xf32, #tpu.memory_space<vmem>>) attributes {dimension_semantics = [#tpu.dimension_semantics<parallel>, #tpu.dimension_semantics<arbitrary>], iteration_bounds = array<i64: 1, 1>, scalar_prefetch = 0 : i64, scratch_operands = 1 : i64, tpu.core_type = #tpu.core_type<tc>, window_params = [{transform_indices = @transform_0, window_bounds = array<i64: 1>}, {transform_indices = @transform_1, window_bounds = array<i64: 128, 128>}, {transform_indices = @transform_2, window_bounds = array<i64: 128, 128>}, {pipeline_mode = #tpu.pipeline_mode<synchronous>, transform_indices = @transform_3, window_bounds = array<i64: 128, 512>}, {pipeline_mode = #tpu.pipeline_mode<synchronous>, transform_indices = @transform_4, window_bounds = array<i64: 1, 512>}, {pipeline_mode = #tpu.pipeline_mode<synchronous>, transform_indices = @transform_5, window_bounds = array<i64: 512, 128>}, {transform_indices = @transform_6, window_bounds = array<i64: 128, 512>}, {transform_indices = @transform_7, window_bounds = array<i64: 128, 128>}]} {
    %c0_i32 = arith.constant 0 : i32
    %0 = arith.cmpi eq, %arg1, %c0_i32 : i32
    %1 = arith.extui %0 : i1 to i32
    %c0_i32_0 = arith.constant 0 : i32
    %2 = arith.cmpi ne, %1, %c0_i32_0 : i32
    scf.if %2 {
      %cst_10 = arith.constant 0.000000e+00 : f32
      %12 = vector.broadcast %cst_10 : f32 to vector<128x128xf32>
      %c0_11 = arith.constant 0 : index
      %c0_12 = arith.constant 0 : index
      %13 = vector.load %arg10[%c0_11, %c0_12] : memref<128x128xf32, #tpu.memory_space<vmem>>, vector<128x128xf32>
      tpu.vector_store %arg10[%c0_11, %c0_12], %12 {strides = array<i32>} : memref<128x128xf32, #tpu.memory_space<vmem>>, vector<128x128xf32>,
    } else {
    }
    %c0 = arith.constant 0 : index
    %c0_1 = arith.constant 0 : index
    %3 = vector.load %arg10[%c0, %c0_1] : memref<128x128xf32, #tpu.memory_space<vmem>>, vector<128x128xf32>
    %c0_2 = arith.constant 0 : index
    %c0_3 = arith.constant 0 : index
    %4 = vector.load %arg3[%c0_2, %c0_3] : memref<128x128xbf16, #tpu.memory_space<vmem>>, vector<128x128xbf16>
    %c0_4 = arith.constant 0 : index
    %c0_5 = arith.constant 0 : index
    %5 = vector.load %arg4[%c0_4, %c0_5] : memref<128x128xbf16, #tpu.memory_space<vmem>>, vector<128x128xbf16>
    %cst = arith.constant dense<0.000000e+00> : vector<128x128xf32>
    %6 = tpu.matmul %4, %5, %cst {dimension_numbers = #tpu.dot_dimension_numbers<[1], [0], [0], [1], [0, 0, 1, 1], [], []>} : vector<128x128xbf16>, vector<128x128xbf16>, vector<128x128xf32> -> vector<128x128xf32>
    %7 = arith.addf %3, %6 : vector<128x128xf32>
    %c0_6 = arith.constant 0 : index
    %c0_7 = arith.constant 0 : index
    %8 = vector.load %arg10[%c0_6, %c0_7] : memref<128x128xf32, #tpu.memory_space<vmem>>, vector<128x128xf32>
    tpu.vector_store %arg10[%c0_6, %c0_7], %7 {strides = array<i32>} : memref<128x128xf32, #tpu.memory_space<vmem>>, vector<128x128xf32>,
    %c0_i32_8 = arith.constant 0 : i32
    %9 = arith.cmpi eq, %arg1, %c0_i32_8 : i32
    %10 = arith.extui %9 : i1 to i32
    %c0_i32_9 = arith.constant 0 : i32
    %11 = arith.cmpi ne, %10, %c0_i32_9 : i32
    scf.if %11 {
      %c0_10 = arith.constant 0 : index
      %c0_11 = arith.constant 0 : index
      %12 = vector.load %arg10[%c0_10, %c0_11] : memref<128x128xf32, #tpu.memory_space<vmem>>, vector<128x128xf32>
      %13 = arith.truncf %12 : vector<128x128xf32> to vector<128x128xbf16>
      %c0_12 = arith.constant 0 : index
      %c0_13 = arith.constant 0 : index
      %14 = vector.load %arg5[%c0_12, %c0_13] : memref<128x512xbf16, #tpu.memory_space<vmem>>, vector<128x512xbf16>
      %cst_14 = arith.constant dense<0.000000e+00> : vector<128x512xf32>
      %15 = tpu.matmul %13, %14, %cst_14 {dimension_numbers = #tpu.dot_dimension_numbers<[1], [0], [0], [1], [0, 0, 1, 1], [], []>} : vector<128x128xbf16>, vector<128x512xbf16>, vector<128x512xf32> -> vector<128x512xf32>
      %c0_15 = arith.constant 0 : index
      %c0_16 = arith.constant 0 : index
      %16 = vector.load %arg6[%c0_15, %c0_16] : memref<1x512xf32, #tpu.memory_space<vmem>>, vector<1x512xf32>
      %17 = vector.broadcast %16 : vector<1x512xf32> to vector<128x512xf32>
      %18 = arith.addf %15, %17 : vector<128x512xf32>
      %c0_17 = arith.constant 0 : index
      %19 = memref.load %arg2[%c0_17] : memref<1xf32, #tpu.memory_space<smem>>
      %cst_18 = arith.constant 0.000000e+00 : f32
      %20 = vector.broadcast %cst_18 : f32 to vector<128x512xf32>
      %21 = arith.cmpf oge, %18, %20 : vector<128x512xf32>
      %22 = vector.broadcast %19 : f32 to vector<128x512xf32>
      %23 = arith.mulf %22, %18 : vector<128x512xf32>
      %24 = arith.select %21, %18, %23 : vector<128x512xi1>, vector<128x512xf32>
      %c0_19 = arith.constant 0 : index
      %c0_20 = arith.constant 0 : index
      %25 = vector.load %arg8[%c0_19, %c0_20] : memref<128x512xbf16, #tpu.memory_space<vmem>>, vector<128x512xbf16>
      %26 = arith.extf %25 : vector<128x512xbf16> to vector<128x512xf32>
      %27 = arith.mulf %24, %26 : vector<128x512xf32>
      %28 = arith.truncf %27 : vector<128x512xf32> to vector<128x512xbf16>
      %c0_21 = arith.constant 0 : index
      %c0_22 = arith.constant 0 : index
      %29 = vector.load %arg7[%c0_21, %c0_22] : memref<512x128xbf16, #tpu.memory_space<vmem>>, vector<512x128xbf16>
      %cst_23 = arith.constant dense<0.000000e+00> : vector<128x128xf32>
      %30 = tpu.matmul %28, %29, %cst_23 {dimension_numbers = #tpu.dot_dimension_numbers<[1], [0], [0], [1], [0, 0, 1, 1], [], []>} : vector<128x512xbf16>, vector<512x128xbf16>, vector<128x128xf32> -> vector<128x128xf32>
      %31 = arith.truncf %30 : vector<128x128xf32> to vector<128x128xbf16>
      %c0_24 = arith.constant 0 : index
      %c0_25 = arith.constant 0 : index
      %32 = vector.load %arg9[%c0_24, %c0_25] : memref<128x128xbf16, #tpu.memory_space<vmem>>, vector<128x128xbf16>
      tpu.vector_store %arg9[%c0_24, %c0_25], %31 {strides = array<i32>} : memref<128x128xbf16, #tpu.memory_space<vmem>>, vector<128x128xbf16>,
    } else {
    }
    return
  }
  func.func @transform_0(%arg0: i32, %arg1: i32) -> i32 {
    %c0_i32 = arith.constant 0 : i32
    %c0_i32_0 = arith.constant 0 : i32
    return %c0_i32 : i32
  }
  func.func @transform_1(%arg0: i32, %arg1: i32) -> (i32, i32) {
    %c0_i32 = arith.constant 0 : i32
    return %arg0, %arg1 : i32, i32
  }
  func.func @transform_2(%arg0: i32, %arg1: i32) -> (i32, i32) {
    %c0_i32 = arith.constant 0 : i32
    %c0_i32_0 = arith.constant 0 : i32
    return %arg1, %c0_i32 : i32, i32
  }
  func.func @transform_3(%arg0: i32, %arg1: i32) -> (i32, i32) {
    %c0_i32 = arith.constant 0 : i32
    %c0_i32_0 = arith.constant 0 : i32
    %c0_i32_1 = arith.constant 0 : i32
    return %c0_i32, %c0_i32_0 : i32, i32
  }
  func.func @transform_4(%arg0: i32, %arg1: i32) -> (i32, i32) {
    %c0_i32 = arith.constant 0 : i32
    %c0_i32_0 = arith.constant 0 : i32
    %c0_i32_1 = arith.constant 0 : i32
    return %c0_i32, %c0_i32_0 : i32, i32
  }
  func.func @transform_5(%arg0: i32, %arg1: i32) -> (i32, i32) {
    %c0_i32 = arith.constant 0 : i32
    %c0_i32_0 = arith.constant 0 : i32
    %c0_i32_1 = arith.constant 0 : i32
    return %c0_i32, %c0_i32_0 : i32, i32
  }
  func.func @transform_6(%arg0: i32, %arg1: i32) -> (i32, i32) {
    %c0_i32 = arith.constant 0 : i32
    %c0_i32_0 = arith.constant 0 : i32
    return %arg0, %c0_i32 : i32, i32
  }
  func.func @transform_7(%arg0: i32, %arg1: i32) -> (i32, i32) {
    %c0_i32 = arith.constant 0 : i32
    %c0_i32_0 = arith.constant 0 : i32
    return %arg0, %c0_i32 : i32, i32
  }
}

</mosaic_0001>

<llo_original>
// kernel: tpu_custom_call.1
$region0: #{tpu_custom_call.1}
  #allocation0 [shape = 'u32[]', space=smem, size = 0x4, offset = 0x4, fixed_abs, tag = 'smem constant byte address 0x4 - core index']
  #allocation1 [shape = 'u32[144,128]{1,0:T(1,128)}', space=vmem, size = 0x12000, scoped, tag = 'internal scratch']
  #allocation2 [shape = 'f32[128,128]{1,0:T(8,128)}', space=vmem, size = 0x10000, scoped, tag = 'scratch operand']
  #allocation3 [shape = 'f32[1]{0:T(128)S(6)}', space=smem, size = 0x200, scoped, tag = 'scoped memory for tpu_custom_call.1']
  %s0 = inlined_call_operand.<no memory space> [shape: f32[1], index: 0, kind: input, shape index: {}]
  %s1 = inlined_call_operand.hbm [shape: bf16[128,128], index: 1, kind: input, shape index: {}]
  %s2 = inlined_call_operand.hbm [shape: bf16[128,128], index: 2, kind: input, shape index: {}]
  %s3 = inlined_call_operand.hbm [shape: bf16[128,512], index: 3, kind: input, shape index: {}]
  %s4 = inlined_call_operand.vmem [shape: f32[1,512], index: 4, kind: input, shape index: {}]
  %s5 = inlined_call_operand.hbm [shape: bf16[512,128], index: 5, kind: input, shape index: {}]
  %s6 = inlined_call_operand.hbm [shape: bf16[128,512], index: 6, kind: input, shape index: {}]
  %s7 = inlined_call_operand.hbm [shape: bf16[128,128], index: 7, kind: output, shape index: {}]
  %s8 = sld [smem:[#allocation0]]
  $region66: #{tpu_custom_call.1} parent=0
    _
  %s10 = ssub.s32 1, %s8
  %s11 = scalar_select 0, %s10, %s8
  %12 = sst [smem:[#allocation3]] %s0
  $region1: #{tpu_custom_call.1} parent=0
    #allocation4 [shape = 'u8[32768]{0}', space=vmem, size = 0x8000, scoped, tag = 'input window, operand 1, single buffered']
    #allocation5 [shape = 's32[1]{0}', space=sflag, size = 0x4, scoped, tag = 'scoped memory for tpu_custom_call.1']
    #allocation6 [shape = 's32[1]{0}', space=sflag, size = 0x4, scoped, tag = 'scoped memory for tpu_custom_call.1']
    #allocation7 [shape = 'u8[32768]{0}', space=vmem, size = 0x8000, scoped, tag = 'input window, operand 2, single buffered']
    #allocation8 [shape = 's32[1]{0}', space=sflag, size = 0x4, scoped, tag = 'scoped memory for tpu_custom_call.1']
    #allocation9 [shape = 'u8[131072]{0}', space=vmem, size = 0x20000, scoped, tag = 'input window, operand 3, single buffered']
    #allocation10 [shape = 'u8[131072]{0}', space=vmem, size = 0x20000, scoped, tag = 'input window, operand 5, single buffered']
    #allocation11 [shape = 's32[1]{0}', space=sflag, size = 0x4, scoped, tag = 'scoped memory for tpu_custom_call.1']
    #allocation12 [shape = 'u8[131072]{0}', space=vmem, size = 0x20000, scoped, tag = 'input window, operand 6, single buffered']
    #allocation13 [shape = 'u8[32768]{0}', space=vmem, size = 0x8000, scoped, tag = 'output window, operand 0, single buffered']
    %13 = vsyncpa [#allocation5], 0
    %14 = vsyncpa [#allocation8], 0
    %15 = vsyncpa [#allocation11], 0
    %16 = vsyncpa [#allocation6], 0
    // Predicated region
    $region2: #{tpu_custom_call.1} parent=1 // pred_check
      _
    $region3: #{tpu_custom_call.1} parent=1 // pred_check_branch
      %18 = sbr.rel (0) target = $region5
    $region4: #{tpu_custom_call.1} parent=1 // pred_region
      _
    $region5: #{tpu_custom_call.1} parent=1 // pred_fallthru
      _
    // Predicated region
    $region6: #{tpu_custom_call.1} parent=1 // pred_check
      _
    $region7: #{tpu_custom_call.1} parent=1 // pred_check_branch
      %20 = sbr.rel (0) target = $region9
    $region8: #{tpu_custom_call.1} parent=1 // pred_region
      %s22 = ssub.s32 1024, 1024
      %23 = vsyncadd [#allocation5], %s22
      %s24 = sshll.u32 [#allocation4], 4
      %s25 = int_to_ptr.vmem [resolvable:$true] %s24
      %30 = dma.hbm_to_vmem [thread:$0]  %s1, 1024, %s25, [#allocation5], 64, 64, 4
    $region9: #{tpu_custom_call.1} parent=1 // pred_fallthru
      _
    // Predicated region
    $region10: #{tpu_custom_call.1} parent=1 // pred_check
      _
    $region11: #{tpu_custom_call.1} parent=1 // pred_check_branch
      %32 = sbr.rel (0) target = $region13
    $region12: #{tpu_custom_call.1} parent=1 // pred_region
      %s34 = ssub.s32 1024, 1024
      %35 = vsyncadd [#allocation8], %s34
      %s36 = sshll.u32 [#allocation7], 4
      %s37 = int_to_ptr.vmem [resolvable:$true] %s36
      %42 = dma.hbm_to_vmem [thread:$0]  %s2, 1024, %s37, [#allocation8], 64, 64, 4
    $region13: #{tpu_custom_call.1} parent=1 // pred_fallthru
      _
    // Predicated region
    $region14: #{tpu_custom_call.1} parent=1 // pred_check
      _
    $region15: #{tpu_custom_call.1} parent=1 // pred_check_branch
      %44 = sbr.rel (0) target = $region17
    $region16: #{tpu_custom_call.1} parent=1 // pred_region
      %s46 = ssub.s32 4096, 4096
      %47 = vsyncadd [#allocation8], %s46
      %s48 = sshll.u32 [#allocation9], 4
      %s49 = int_to_ptr.vmem [resolvable:$true] %s48
      %54 = dma.hbm_to_vmem [thread:$0]  %s3, 4096, %s49, [#allocation8], 256, 256, 16
    $region17: #{tpu_custom_call.1} parent=1 // pred_fallthru
      _
    // Predicated region
    $region18: #{tpu_custom_call.1} parent=1 // pred_check
      _
    $region19: #{tpu_custom_call.1} parent=1 // pred_check_branch
      %56 = sbr.rel (0) target = $region21
    $region20: #{tpu_custom_call.1} parent=1 // pred_region
      _
    $region21: #{tpu_custom_call.1} parent=1 // pred_fallthru
      _
    // Predicated region
    $region22: #{tpu_custom_call.1} parent=1 // pred_check
      _
    $region23: #{tpu_custom_call.1} parent=1 // pred_check_branch
      %58 = sbr.rel (0) target = $region25
    $region24: #{tpu_custom_call.1} parent=1 // pred_region
      %s60 = ssub.s32 4096, 4096
      %61 = vsyncadd [#allocation11], %s60
      %s62 = sshll.u32 [#allocation10], 4
      %s63 = int_to_ptr.vmem [resolvable:$true] %s62
      %68 = dma.hbm_to_vmem [thread:$0]  %s5, 4096, %s63, [#allocation11], 64, 64, 4
    $region25: #{tpu_custom_call.1} parent=1 // pred_fallthru
      _
    // Predicated region
    $region26: #{tpu_custom_call.1} parent=1 // pred_check
      _
    $region27: #{tpu_custom_call.1} parent=1 // pred_check_branch
      %70 = sbr.rel (0) target = $region29
    $region28: #{tpu_custom_call.1} parent=1 // pred_region
      %s72 = ssub.s32 4096, 4096
      %73 = vsyncadd [#allocation11], %s72
      %s74 = sshll.u32 [#allocation12], 4
      %s75 = int_to_ptr.vmem [resolvable:$true] %s74
      %80 = dma.hbm_to_vmem [thread:$0]  %s6, 4096, %s75, [#allocation11], 256, 256, 16
    $region29: #{tpu_custom_call.1} parent=1 // pred_fallthru
      _
    // Predicated region
    $region30: #{tpu_custom_call.1} parent=1 // pred_check
      _
    $region31: #{tpu_custom_call.1} parent=1 // pred_check_branch
      %82 = sbr.rel (0) target = $region33
    $region32: #{tpu_custom_call.1} parent=1 // pred_region
      %83 = dma.done [#allocation5], 1024
    $region33: #{tpu_custom_call.1} parent=1 // pred_fallthru
      _
    // Predicated region
    $region34: #{tpu_custom_call.1} parent=1 // pred_check
      _
    $region35: #{tpu_custom_call.1} parent=1 // pred_check_branch
      %85 = sbr.rel (0) target = $region37
    $region36: #{tpu_custom_call.1} parent=1 // pred_region
      %86 = dma.done [#allocation8], 1024
    $region37: #{tpu_custom_call.1} parent=1 // pred_fallthru
      _
    // Predicated region
    $region38: #{tpu_custom_call.1} parent=1 // pred_check
      _
    $region39: #{tpu_custom_call.1} parent=1 // pred_check_branch
      %88 = sbr.rel (0) target = $region41
    $region40: #{tpu_custom_call.1} parent=1 // pred_region
      %89 = dma.done [#allocation8], 4096
    $region41: #{tpu_custom_call.1} parent=1 // pred_fallthru
      _
    // Predicated region
    $region42: #{tpu_custom_call.1} parent=1 // pred_check
      _
    $region43: #{tpu_custom_call.1} parent=1 // pred_check_branch
      %91 = sbr.rel (0) target = $region45
    $region44: #{tpu_custom_call.1} parent=1 // pred_region
      %92 = dma.done [#allocation11], 4096
    $region45: #{tpu_custom_call.1} parent=1 // pred_fallthru
      _
    // Predicated region
    $region46: #{tpu_custom_call.1} parent=1 // pred_check
      _
    $region47: #{tpu_custom_call.1} parent=1 // pred_check_branch
      %94 = sbr.rel (0) target = $region49
    $region48: #{tpu_custom_call.1} parent=1 // pred_region
      %95 = dma.done [#allocation11], 4096
    $region49: #{tpu_custom_call.1} parent=1 // pred_fallthru
      _
    %p97 = scmp.eq.s32.totalorder 0, 0
    // Predicated region
    $region50: #{tpu_custom_call.1} parent=1 // pred_check
      %p98 = pneg %p97
    $region51: #{tpu_custom_call.1} parent=1 // pred_check_branch
      %100 = sbr.rel (%p98) target = $region53
    $region52: #{tpu_custom_call.1} parent=1 // pred_region
      %101 = vst [vmem:[#allocation2] sm:$0xff] 0.0
      %102 = vst [vmem:[#allocation2 + $0x8] sm:$0xff] 0.0
      %103 = vst [vmem:[#allocation2 + $0x10] sm:$0xff] 0.0
      %104 = vst [vmem:[#allocation2 + $0x18] sm:$0xff] 0.0
      %105 = vst [vmem:[#allocation2 + $0x20] sm:$0xff] 0.0
      %106 = vst [vmem:[#allocation2 + $0x28] sm:$0xff] 0.0
      %107 = vst [vmem:[#allocation2 + $0x30] sm:$0xff] 0.0
      %108 = vst [vmem:[#allocation2 + $0x38] sm:$0xff] 0.0
      %109 = vst [vmem:[#allocation2 + $0x40] sm:$0xff] 0.0
      %110 = vst [vmem:[#allocation2 + $0x48] sm:$0xff] 0.0
      %111 = vst [vmem:[#allocation2 + $0x50] sm:$0xff] 0.0
      %112 = vst [vmem:[#allocation2 + $0x58] sm:$0xff] 0.0
      %113 = vst [vmem:[#allocation2 + $0x60] sm:$0xff] 0.0
      %114 = vst [vmem:[#allocation2 + $0x68] sm:$0xff] 0.0
      %115 = vst [vmem:[#allocation2 + $0x70] sm:$0xff] 0.0
      %116 = vst [vmem:[#allocation2 + $0x78] sm:$0xff] 0.0
    $region53: #{tpu_custom_call.1} parent=1 // pred_fallthru
      _
    %v117 = vld [vmem:[#allocation2] sm:$0xff]
    %v118 = vld [vmem:[#allocation2 + $0x8] sm:$0xff]
    %v119 = vld [vmem:[#allocation2 + $0x10] sm:$0xff]
    %v120 = vld [vmem:[#allocation2 + $0x18] sm:$0xff]
    %v121 = vld [vmem:[#allocation2 + $0x20] sm:$0xff]
    %v122 = vld [vmem:[#allocation2 + $0x28] sm:$0xff]
    %v123 = vld [vmem:[#allocation2 + $0x30] sm:$0xff]
    %v124 = vld [vmem:[#allocation2 + $0x38] sm:$0xff]
    %v125 = vld [vmem:[#allocation2 + $0x40] sm:$0xff]
    %v126 = vld [vmem:[#allocation2 + $0x48] sm:$0xff]
    %v127 = vld [vmem:[#allocation2 + $0x50] sm:$0xff]
    %v128 = vld [vmem:[#allocation2 + $0x58] sm:$0xff]
    %v129 = vld [vmem:[#allocation2 + $0x60] sm:$0xff]
    %v130 = vld [vmem:[#allocation2 + $0x68] sm:$0xff]
    %v131 = vld [vmem:[#allocation2 + $0x70] sm:$0xff]
    %v132 = vld [vmem:[#allocation2 + $0x78] sm:$0xff]
    %v133 = vld [vmem:[#allocation4] sm:$0xf]
    %v134 = vld [vmem:[#allocation4 + $0x4] sm:$0xf]
    %v135 = vld [vmem:[#allocation4 + $0x8] sm:$0xf]
    %v136 = vld [vmem:[#allocation4 + $0xc] sm:$0xf]
    %v137 = vld [vmem:[#allocation4 + $0x10] sm:$0xf]
    %v138 = vld [vmem:[#allocation4 + $0x14] sm:$0xf]
    %v139 = vld [vmem:[#allocation4 + $0x18] sm:$0xf]
    %v140 = vld [vmem:[#allocation4 + $0x1c] sm:$0xf]
    %v141 = vld [vmem:[#allocation4 + $0x20] sm:$0xf]
    %v142 = vld [vmem:[#allocation4 + $0x24] sm:$0xf]
    %v143 = vld [vmem:[#allocation4 + $0x28] sm:$0xf]
    %v144 = vld [vmem:[#allocation4 + $0x2c] sm:$0xf]
    %v145 = vld [vmem:[#allocation4 + $0x30] sm:$0xf]
    %v146 = vld [vmem:[#allocation4 + $0x34] sm:$0xf]
    %v147 = vld [vmem:[#allocation4 + $0x38] sm:$0xf]
    %v148 = vld [vmem:[#allocation4 + $0x3c] sm:$0xf]
    %v149 = vld [vmem:[#allocation7] sm:$0xf]
    %v150 = vld [vmem:[#allocation7 + $0x4] sm:$0xf]
    %v151 = vld [vmem:[#allocation7 + $0x8] sm:$0xf]
    %v152 = vld [vmem:[#allocation7 + $0xc] sm:$0xf]
    %v153 = vld [vmem:[#allocation7 + $0x10] sm:$0xf]
    %v154 = vld [vmem:[#allocation7 + $0x14] sm:$0xf]
    %v155 = vld [vmem:[#allocation7 + $0x18] sm:$0xf]
    %v156 = vld [vmem:[#allocation7 + $0x1c] sm:$0xf]
    %v157 = vld [vmem:[#allocation7 + $0x20] sm:$0xf]
    %v158 = vld [vmem:[#allocation7 + $0x24] sm:$0xf]
    %v159 = vld [vmem:[#allocation7 + $0x28] sm:$0xf]
    %v160 = vld [vmem:[#allocation7 + $0x2c] sm:$0xf]
    %v161 = vld [vmem:[#allocation7 + $0x30] sm:$0xf]
    %v162 = vld [vmem:[#allocation7 + $0x34] sm:$0xf]
    %v163 = vld [vmem:[#allocation7 + $0x38] sm:$0xf]
    %v164 = vld [vmem:[#allocation7 + $0x3c] sm:$0xf]
    %v181 = vunpack.c.l.b16 %v133
    %v182 = vunpack.c.l.b16 %v134
    %v183 = vunpack.c.l.b16 %v135
    %v184 = vunpack.c.l.b16 %v136
    %v185 = vunpack.c.l.b16 %v137
    %v186 = vunpack.c.l.b16 %v138
    %v187 = vunpack.c.l.b16 %v139
    %v188 = vunpack.c.l.b16 %v140
    %v189 = vunpack.c.l.b16 %v141
    %v190 = vunpack.c.l.b16 %v142
    %v191 = vunpack.c.l.b16 %v143
    %v192 = vunpack.c.l.b16 %v144
    %v193 = vunpack.c.l.b16 %v145
    %v194 = vunpack.c.l.b16 %v146
    %v195 = vunpack.c.l.b16 %v147
    %v196 = vunpack.c.l.b16 %v148
    %v197 = vpack.c.b16 %v182, %v181
    %v198 = vpack.c.b16 %v184, %v183
    %v199 = vpack.c.b16 %v186, %v185
    %v200 = vpack.c.b16 %v188, %v187
    %v201 = vpack.c.b16 %v190, %v189
    %v202 = vpack.c.b16 %v192, %v191
    %v203 = vpack.c.b16 %v194, %v193
    %v204 = vpack.c.b16 %v196, %v195
    %v229 = vunpack.c.l.b16 %v149
    %v230 = vunpack.c.l.b16 %v150
    %v231 = vunpack.c.l.b16 %v151
    %v232 = vunpack.c.l.b16 %v152
    %v233 = vunpack.c.l.b16 %v153
    %v234 = vunpack.c.l.b16 %v154
    %v235 = vunpack.c.l.b16 %v155
    %v236 = vunpack.c.l.b16 %v156
    %v237 = vunpack.c.l.b16 %v157
    %v238 = vunpack.c.l.b16 %v158
    %v239 = vunpack.c.l.b16 %v159
    %v240 = vunpack.c.l.b16 %v160
    %v241 = vunpack.c.l.b16 %v161
    %v242 = vunpack.c.l.b16 %v162
    %v243 = vunpack.c.l.b16 %v163
    %v244 = vunpack.c.l.b16 %v164
    %v245 = vpack.c.b16 %v230, %v229
    %v246 = vpack.c.b16 %v232, %v231
    %v247 = vpack.c.b16 %v234, %v233
    %v248 = vpack.c.b16 %v236, %v235
    %v249 = vpack.c.b16 %v238, %v237
    %v250 = vpack.c.b16 %v240, %v239
    %v251 = vpack.c.b16 %v242, %v241
    %v252 = vpack.c.b16 %v244, %v243
    %261 = vmatprep.subr.bf16.mxu0 0
    %262 = vmatpush1.bf16.msra.mxu0 %v252
    %263 = vmatprep.subr.bf16.mxu0 0
    %264 = vmatpush1.bf16.msra.mxu0 %v251
    %265 = vmatprep.subr.bf16.mxu0 0
    %266 = vmatpush1.bf16.msra.mxu0 %v250
    %267 = vmatprep.subr.bf16.mxu0 0
    %268 = vmatpush1.bf16.msra.mxu0 %v249
    %269 = vmatprep.subr.bf16.mxu0 0
    %270 = vmatpush1.bf16.msra.mxu0 %v248
    %271 = vmatprep.subr.bf16.mxu0 0
    %272 = vmatpush1.bf16.msra.mxu0 %v247
    %273 = vmatprep.subr.bf16.mxu0 0
    %274 = vmatpush1.bf16.msra.mxu0 %v246
    %275 = vmatprep.subr.bf16.mxu0 0
    %276 = vmatpush1.bf16.msra.mxu0 %v245
    %277 = vmatprep.subr.bf16.mxu0 0
    %278 = vmatpush2.bf16.msra.mxu0 0
    %279 = vmatprep.subr.bf16.mxu0 0
    %280 = vmatpush2.bf16.msra.mxu0 0
    %281 = vmatprep.subr.bf16.mxu0 0
    %282 = vmatpush2.bf16.msra.mxu0 0
    %283 = vmatprep.subr.bf16.mxu0 0
    %284 = vmatpush2.bf16.msra.mxu0 0
    %285 = vmatprep.subr.bf16.mxu0 0
    %286 = vmatpush2.bf16.msra.mxu0 0
    %287 = vmatprep.subr.bf16.mxu0 0
    %288 = vmatpush2.bf16.msra.mxu0 0
    %289 = vmatprep.subr.bf16.mxu0 0
    %290 = vmatpush2.bf16.msra.mxu0 0
    %291 = vmatprep.subr.bf16.mxu0 0
    %292 = vmatpush2.bf16.msra.mxu0 0
    %293 = vmatprep.mubr.bf16.mxu0 0
    %294 = vmatmul.mubr.bf16.gmra.mxu0 %v197
    %v295 = vpop.f32.mrf.mxu0
    %v296 = vadd.f32 0.0, %v295
    %v297 = vpop.f32.mrf.mxu0
    %v298 = vpop.f32.mrf.mxu0
    %v299 = vadd.f32 0.0, %v298
    %v300 = vpop.f32.mrf.mxu0
    %301 = vmatprep.mubr.bf16.mxu0 0
    %302 = vmatmul.mubr.bf16.gmra.mxu0 %v198
    %v303 = vpop.f32.mrf.mxu0
    %v304 = vadd.f32 0.0, %v303
    %v305 = vpop.f32.mrf.mxu0
    %v306 = vpop.f32.mrf.mxu0
    %v307 = vadd.f32 0.0, %v306
    %v308 = vpop.f32.mrf.mxu0
    %309 = vmatprep.mubr.bf16.mxu0 0
    %310 = vmatmul.mubr.bf16.gmra.mxu0 %v199
    %v311 = vpop.f32.mrf.mxu0
    %v312 = vadd.f32 0.0, %v311
    %v313 = vpop.f32.mrf.mxu0
    %v314 = vpop.f32.mrf.mxu0
    %v315 = vadd.f32 0.0, %v314
    %v316 = vpop.f32.mrf.mxu0
    %317 = vmatprep.mubr.bf16.mxu0 0
    %318 = vmatmul.mubr.bf16.gmra.mxu0 %v200
    %v319 = vpop.f32.mrf.mxu0
    %v320 = vadd.f32 0.0, %v319
    %v321 = vpop.f32.mrf.mxu0
    %v322 = vpop.f32.mrf.mxu0
    %v323 = vadd.f32 0.0, %v322
    %v324 = vpop.f32.mrf.mxu0
    %325 = vmatprep.mubr.bf16.mxu0 0
    %326 = vmatmul.mubr.bf16.gmra.mxu0 %v201
    %v327 = vpop.f32.mrf.mxu0
    %v328 = vadd.f32 0.0, %v327
    %v329 = vpop.f32.mrf.mxu0
    %v330 = vpop.f32.mrf.mxu0
    %v331 = vadd.f32 0.0, %v330
    %v332 = vpop.f32.mrf.mxu0
    %333 = vmatprep.mubr.bf16.mxu0 0
    %334 = vmatmul.mubr.bf16.gmra.mxu0 %v202
    %v335 = vpop.f32.mrf.mxu0
    %v336 = vadd.f32 0.0, %v335
    %v337 = vpop.f32.mrf.mxu0
    %v338 = vpop.f32.mrf.mxu0
    %v339 = vadd.f32 0.0, %v338
    %v340 = vpop.f32.mrf.mxu0
    %341 = vmatprep.mubr.bf16.mxu0 0
    %342 = vmatmul.mubr.bf16.gmra.mxu0 %v203
    %v343 = vpop.f32.mrf.mxu0
    %v344 = vadd.f32 0.0, %v343
    %v345 = vpop.f32.mrf.mxu0
    %v346 = vpop.f32.mrf.mxu0
    %v347 = vadd.f32 0.0, %v346
    %v348 = vpop.f32.mrf.mxu0
    %349 = vmatprep.mubr.bf16.mxu0 0
    %350 = vmatmul.mubr.bf16.gmra.mxu0 %v204
    %v351 = vpop.f32.mrf.mxu0
    %v352 = vadd.f32 0.0, %v351
    %v353 = vpop.f32.mrf.mxu0
    %v354 = vpop.f32.mrf.mxu0
    %v355 = vadd.f32 0.0, %v354
    %v356 = vpop.f32.mrf.mxu0
    %357 = vdwg.mxu0
    %v358 = vadd.f32 %v117, %v296
    %v359 = vadd.f32 %v118, %v299
    %v360 = vadd.f32 %v119, %v304
    %v361 = vadd.f32 %v120, %v307
    %v362 = vadd.f32 %v121, %v312
    %v363 = vadd.f32 %v122, %v315
    %v364 = vadd.f32 %v123, %v320
    %v365 = vadd.f32 %v124, %v323
    %v366 = vadd.f32 %v125, %v328
    %v367 = vadd.f32 %v126, %v331
    %v368 = vadd.f32 %v127, %v336
    %v369 = vadd.f32 %v128, %v339
    %v370 = vadd.f32 %v129, %v344
    %v371 = vadd.f32 %v130, %v347
    %v372 = vadd.f32 %v131, %v352
    %v373 = vadd.f32 %v132, %v355
    %374 = vst [vmem:[#allocation2] sm:$0xff] %v358
    %375 = vst [vmem:[#allocation2 + $0x8] sm:$0xff] %v359
    %376 = vst [vmem:[#allocation2 + $0x10] sm:$0xff] %v360
    %377 = vst [vmem:[#allocation2 + $0x18] sm:$0xff] %v361
    %378 = vst [vmem:[#allocation2 + $0x20] sm:$0xff] %v362
    %379 = vst [vmem:[#allocation2 + $0x28] sm:$0xff] %v363
    %380 = vst [vmem:[#allocation2 + $0x30] sm:$0xff] %v364
    %381 = vst [vmem:[#allocation2 + $0x38] sm:$0xff] %v365
    %382 = vst [vmem:[#allocation2 + $0x40] sm:$0xff] %v366
    %383 = vst [vmem:[#allocation2 + $0x48] sm:$0xff] %v367
    %384 = vst [vmem:[#allocation2 + $0x50] sm:$0xff] %v368
    %385 = vst [vmem:[#allocation2 + $0x58] sm:$0xff] %v369
    %386 = vst [vmem:[#allocation2 + $0x60] sm:$0xff] %v370
    %387 = vst [vmem:[#allocation2 + $0x68] sm:$0xff] %v371
    %388 = vst [vmem:[#allocation2 + $0x70] sm:$0xff] %v372
    %389 = vst [vmem:[#allocation2 + $0x78] sm:$0xff] %v373
    // Predicated region
    $region54: #{tpu_custom_call.1} parent=1 // pred_check
      %p390 = pneg %p97
    $region55: #{tpu_custom_call.1} parent=1 // pred_check_branch
      %392 = sbr.rel (%p390) target = $region57
    $region56: #{tpu_custom_call.1} parent=1 // pred_region
      %v393 = vld [vmem:[#allocation2] sm:$0xff]
      %v394 = vld [vmem:[#allocation2 + $0x8] sm:$0xff]
      %v395 = vld [vmem:[#allocation2 + $0x10] sm:$0xff]
      %v396 = vld [vmem:[#allocation2 + $0x18] sm:$0xff]
      %v397 = vld [vmem:[#allocation2 + $0x20] sm:$0xff]
      %v398 = vld [vmem:[#allocation2 + $0x28] sm:$0xff]
      %v399 = vld [vmem:[#allocation2 + $0x30] sm:$0xff]
      %v400 = vld [vmem:[#allocation2 + $0x38] sm:$0xff]
      %v401 = vld [vmem:[#allocation2 + $0x40] sm:$0xff]
      %v402 = vld [vmem:[#allocation2 + $0x48] sm:$0xff]
      %v403 = vld [vmem:[#allocation2 + $0x50] sm:$0xff]
      %v404 = vld [vmem:[#allocation2 + $0x58] sm:$0xff]
      %v405 = vld [vmem:[#allocation2 + $0x60] sm:$0xff]
      %v406 = vld [vmem:[#allocation2 + $0x68] sm:$0xff]
      %v407 = vld [vmem:[#allocation2 + $0x70] sm:$0xff]
      %v408 = vld [vmem:[#allocation2 + $0x78] sm:$0xff]
      %v409 = vpack.c.bf16 %v394, %v393
      %v410 = vpack.c.bf16 %v396, %v395
      %v411 = vpack.c.bf16 %v398, %v397
      %v412 = vpack.c.bf16 %v400, %v399
      %v413 = vpack.c.bf16 %v402, %v401
      %v414 = vpack.c.bf16 %v404, %v403
      %v415 = vpack.c.bf16 %v406, %v405
      %v416 = vpack.c.bf16 %v408, %v407
      %v417 = vld [vmem:[#allocation9] sm:$0xff]
      %v418 = vld [vmem:[#allocation9 + $0x8] sm:$0xff]
      %v419 = vld [vmem:[#allocation9 + $0x10] sm:$0xff]
      %v420 = vld [vmem:[#allocation9 + $0x18] sm:$0xff]
      %v421 = vld [vmem:[#allocation9 + $0x20] sm:$0xff]
      %v422 = vld [vmem:[#allocation9 + $0x28] sm:$0xff]
      %v423 = vld [vmem:[#allocation9 + $0x30] sm:$0xff]
      %v424 = vld [vmem:[#allocation9 + $0x38] sm:$0xff]
      %v425 = vld [vmem:[#allocation9 + $0x40] sm:$0xff]
      %v426 = vld [vmem:[#allocation9 + $0x48] sm:$0xff]
      %v427 = vld [vmem:[#allocation9 + $0x50] sm:$0xff]
      %v428 = vld [vmem:[#allocation9 + $0x58] sm:$0xff]
      %v429 = vld [vmem:[#allocation9 + $0x60] sm:$0xff]
      %v430 = vld [vmem:[#allocation9 + $0x68] sm:$0xff]
      %v431 = vld [vmem:[#allocation9 + $0x70] sm:$0xff]
      %v432 = vld [vmem:[#allocation9 + $0x78] sm:$0xff]
      %v433 = vld [vmem:[#allocation9 + $0x80] sm:$0xff]
      %v434 = vld [vmem:[#allocation9 + $0x88] sm:$0xff]
      %v435 = vld [vmem:[#allocation9 + $0x90] sm:$0xff]
      %v436 = vld [vmem:[#allocation9 + $0x98] sm:$0xff]
      %v437 = vld [vmem:[#allocation9 + $0xa0] sm:$0xff]
      %v438 = vld [vmem:[#allocation9 + $0xa8] sm:$0xff]
      %v439 = vld [vmem:[#allocation9 + $0xb0] sm:$0xff]
      %v440 = vld [vmem:[#allocation9 + $0xb8] sm:$0xff]
      %v441 = vld [vmem:[#allocation9 + $0xc0] sm:$0xff]
      %v442 = vld [vmem:[#allocation9 + $0xc8] sm:$0xff]
      %v443 = vld [vmem:[#allocation9 + $0xd0] sm:$0xff]
      %v444 = vld [vmem:[#allocation9 + $0xd8] sm:$0xff]
      %v445 = vld [vmem:[#allocation9 + $0xe0] sm:$0xff]
      %v446 = vld [vmem:[#allocation9 + $0xe8] sm:$0xff]
      %v447 = vld [vmem:[#allocation9 + $0xf0] sm:$0xff]
      %v448 = vld [vmem:[#allocation9 + $0xf8] sm:$0xff]
      %v449 = vld [vmem:[%s4] sm:$0xf]
      %v451 = vlaneseq
      %v452 = vshrl.u32 %v451, 7
      %v453 = vsub.s32 0, %v452
      %v454 = vrot.slane %v449, %v453
      %v455 = vlaneseq
      %v456 = vshrl.u32 %v455, 7
      %v457 = vsub.s32 1, %v456
      %v458 = vrot.slane %v449, %v457
      %v459 = vlaneseq
      %v460 = vshrl.u32 %v459, 7
      %v461 = vsub.s32 2, %v460
      %v462 = vrot.slane %v449, %v461
      %v463 = vlaneseq
      %v464 = vshrl.u32 %v463, 7
      %v465 = vsub.s32 3, %v464
      %v466 = vrot.slane %v449, %v465
      %v503 = vunpack.c.l.b16 %v417
      %v504 = vunpack.c.h.b16 %v417
      %v505 = vunpack.c.l.b16 %v418
      %v506 = vunpack.c.h.b16 %v418
      %v507 = vunpack.c.l.b16 %v419
      %v508 = vunpack.c.h.b16 %v419
      %v509 = vunpack.c.l.b16 %v420
      %v510 = vunpack.c.h.b16 %v420
      %v511 = vunpack.c.l.b16 %v421
      %v512 = vunpack.c.h.b16 %v421
      %v513 = vunpack.c.l.b16 %v422
      %v514 = vunpack.c.h.b16 %v422
      %v515 = vunpack.c.l.b16 %v423
      %v516 = vunpack.c.h.b16 %v423
      %v517 = vunpack.c.l.b16 %v424
      %v518 = vunpack.c.h.b16 %v424
      %v519 = vunpack.c.l.b16 %v425
      %v520 = vunpack.c.h.b16 %v425
      %v521 = vunpack.c.l.b16 %v426
      %v522 = vunpack.c.h.b16 %v426
      %v523 = vunpack.c.l.b16 %v427
      %v524 = vunpack.c.h.b16 %v427
      %v525 = vunpack.c.l.b16 %v428
      %v526 = vunpack.c.h.b16 %v428
      %v527 = vunpack.c.l.b16 %v429
      %v528 = vunpack.c.h.b16 %v429
      %v529 = vunpack.c.l.b16 %v430
      %v530 = vunpack.c.h.b16 %v430
      %v531 = vunpack.c.l.b16 %v431
      %v532 = vunpack.c.h.b16 %v431
      %v533 = vunpack.c.l.b16 %v432
      %v534 = vunpack.c.h.b16 %v432
      %v535 = vunpack.c.l.b16 %v433
      %v536 = vunpack.c.h.b16 %v433
      %v537 = vunpack.c.l.b16 %v434
      %v538 = vunpack.c.h.b16 %v434
      %v539 = vunpack.c.l.b16 %v435
      %v540 = vunpack.c.h.b16 %v435
      %v541 = vunpack.c.l.b16 %v436
      %v542 = vunpack.c.h.b16 %v436
      %v543 = vunpack.c.l.b16 %v437
      %v544 = vunpack.c.h.b16 %v437
      %v545 = vunpack.c.l.b16 %v438
      %v546 = vunpack.c.h.b16 %v438
      %v547 = vunpack.c.l.b16 %v439
      %v548 = vunpack.c.h.b16 %v439
      %v549 = vunpack.c.l.b16 %v440
      %v550 = vunpack.c.h.b16 %v440
      %v551 = vunpack.c.l.b16 %v441
      %v552 = vunpack.c.h.b16 %v441
      %v553 = vunpack.c.l.b16 %v442
      %v554 = vunpack.c.h.b16 %v442
      %v555 = vunpack.c.l.b16 %v443
      %v556 = vunpack.c.h.b16 %v443
      %v557 = vunpack.c.l.b16 %v444
      %v558 = vunpack.c.h.b16 %v444
      %v559 = vunpack.c.l.b16 %v445
      %v560 = vunpack.c.h.b16 %v445
      %v561 = vunpack.c.l.b16 %v446
      %v562 = vunpack.c.h.b16 %v446
      %v563 = vunpack.c.l.b16 %v447
      %v564 = vunpack.c.h.b16 %v447
      %v565 = vunpack.c.l.b16 %v448
      %v566 = vunpack.c.h.b16 %v448
      %v567 = vpack.c.b16 %v507, %v503
      %v568 = vpack.c.b16 %v508, %v504
      %v569 = vpack.c.b16 %v509, %v505
      %v570 = vpack.c.b16 %v510, %v506
      %v571 = vpack.c.b16 %v515, %v511
      %v572 = vpack.c.b16 %v516, %v512
      %v573 = vpack.c.b16 %v517, %v513
      %v574 = vpack.c.b16 %v518, %v514
      %v575 = vpack.c.b16 %v523, %v519
      %v576 = vpack.c.b16 %v524, %v520
      %v577 = vpack.c.b16 %v525, %v521
      %v578 = vpack.c.b16 %v526, %v522
      %v579 = vpack.c.b16 %v531, %v527
      %v580 = vpack.c.b16 %v532, %v528
      %v581 = vpack.c.b16 %v533, %v529
      %v582 = vpack.c.b16 %v534, %v530
      %v583 = vpack.c.b16 %v539, %v535
      %v584 = vpack.c.b16 %v540, %v536
      %v585 = vpack.c.b16 %v541, %v537
      %v586 = vpack.c.b16 %v542, %v538
      %v587 = vpack.c.b16 %v547, %v543
      %v588 = vpack.c.b16 %v548, %v544
      %v589 = vpack.c.b16 %v549, %v545
      %v590 = vpack.c.b16 %v550, %v546
      %v591 = vpack.c.b16 %v555, %v551
      %v592 = vpack.c.b16 %v556, %v552
      %v593 = vpack.c.b16 %v557, %v553
      %v594 = vpack.c.b16 %v558, %v554
      %v595 = vpack.c.b16 %v563, %v559
      %v596 = vpack.c.b16 %v564, %v560
      %v597 = vpack.c.b16 %v565, %v561
      %v598 = vpack.c.b16 %v566, %v562
      %631 = vmatprep.subr.bf16.mxu0 %v596
      %632 = vmatpush1.bf16.msra.mxu0 %v595
      %633 = vmatprep.subr.bf16.mxu0 %v592
      %634 = vmatpush1.bf16.msra.mxu0 %v591
      %635 = vmatprep.subr.bf16.mxu0 %v588
      %636 = vmatpush1.bf16.msra.mxu0 %v587
      %637 = vmatprep.subr.bf16.mxu0 %v584
      %638 = vmatpush1.bf16.msra.mxu0 %v583
      %639 = vmatprep.subr.bf16.mxu0 %v580
      %640 = vmatpush1.bf16.msra.mxu0 %v579
      %641 = vmatprep.subr.bf16.mxu0 %v576
      %642 = vmatpush1.bf16.msra.mxu0 %v575
      %643 = vmatprep.subr.bf16.mxu0 %v572
      %644 = vmatpush1.bf16.msra.mxu0 %v571
      %645 = vmatprep.subr.bf16.mxu0 %v568
      %646 = vmatpush1.bf16.msra.mxu0 %v567
      %647 = vmatprep.subr.bf16.mxu0 0
      %648 = vmatpush2.bf16.msra.mxu0 0
      %649 = vmatprep.subr.bf16.mxu0 0
      %650 = vmatpush2.bf16.msra.mxu0 0
      %651 = vmatprep.subr.bf16.mxu0 0
      %652 = vmatpush2.bf16.msra.mxu0 0
      %653 = vmatprep.subr.bf16.mxu0 0
      %654 = vmatpush2.bf16.msra.mxu0 0
      %655 = vmatprep.subr.bf16.mxu0 0
      %656 = vmatpush2.bf16.msra.mxu0 0
      %657 = vmatprep.subr.bf16.mxu0 0
      %658 = vmatpush2.bf16.msra.mxu0 0
      %659 = vmatprep.subr.bf16.mxu0 0
      %660 = vmatpush2.bf16.msra.mxu0 0
      %661 = vmatprep.subr.bf16.mxu0 0
      %662 = vmatpush2.bf16.msra.mxu0 0
      %663 = vmatprep.mubr.bf16.mxu0 0
      %664 = vmatmul.mubr.bf16.gmra.mxu0 %v409
      %v665 = vpop.f32.mrf.mxu0
      %v666 = vadd.f32 %v454, %v665
      %v667 = vpop.f32.mrf.mxu0
      %v668 = vadd.f32 %v458, %v667
      %v669 = vpop.f32.mrf.mxu0
      %v670 = vadd.f32 %v454, %v669
      %v671 = vpop.f32.mrf.mxu0
      %v672 = vadd.f32 %v458, %v671
      %673 = vmatprep.mubr.bf16.mxu0 0
      %674 = vmatmul.mubr.bf16.gmra.mxu0 %v410
      %v675 = vpop.f32.mrf.mxu0
      %v676 = vadd.f32 %v454, %v675
      %v677 = vpop.f32.mrf.mxu0
      %v678 = vadd.f32 %v458, %v677
      %v679 = vpop.f32.mrf.mxu0
      %v680 = vadd.f32 %v454, %v679
      %v681 = vpop.f32.mrf.mxu0
      %v682 = vadd.f32 %v458, %v681
      %683 = vmatprep.mubr.bf16.mxu0 0
      %684 = vmatmul.mubr.bf16.gmra.mxu0 %v411
      %v685 = vpop.f32.mrf.mxu0
      %v686 = vadd.f32 %v454, %v685
      %v687 = vpop.f32.mrf.mxu0
      %v688 = vadd.f32 %v458, %v687
      %v689 = vpop.f32.mrf.mxu0
      %v690 = vadd.f32 %v454, %v689
      %v691 = vpop.f32.mrf.mxu0
      %v692 = vadd.f32 %v458, %v691
      %693 = vmatprep.mubr.bf16.mxu0 0
      %694 = vmatmul.mubr.bf16.gmra.mxu0 %v412
      %v695 = vpop.f32.mrf.mxu0
      %v696 = vadd.f32 %v454, %v695
      %v697 = vpop.f32.mrf.mxu0
      %v698 = vadd.f32 %v458, %v697
      %v699 = vpop.f32.mrf.mxu0
      %v700 = vadd.f32 %v454, %v699
      %v701 = vpop.f32.mrf.mxu0
      %v702 = vadd.f32 %v458, %v701
      %703 = vmatprep.mubr.bf16.mxu0 0
      %704 = vmatmul.mubr.bf16.gmra.mxu0 %v413
      %v705 = vpop.f32.mrf.mxu0
      %v706 = vadd.f32 %v454, %v705
      %v707 = vpop.f32.mrf.mxu0
      %v708 = vadd.f32 %v458, %v707
      %v709 = vpop.f32.mrf.mxu0
      %v710 = vadd.f32 %v454, %v709
      %v711 = vpop.f32.mrf.mxu0
      %v712 = vadd.f32 %v458, %v711
      %713 = vmatprep.mubr.bf16.mxu0 0
      %714 = vmatmul.mubr.bf16.gmra.mxu0 %v414
      %v715 = vpop.f32.mrf.mxu0
      %v716 = vadd.f32 %v454, %v715
      %v717 = vpop.f32.mrf.mxu0
      %v718 = vadd.f32 %v458, %v717
      %v719 = vpop.f32.mrf.mxu0
      %v720 = vadd.f32 %v454, %v719
      %v721 = vpop.f32.mrf.mxu0
      %v722 = vadd.f32 %v458, %v721
      %723 = vmatprep.mubr.bf16.mxu0 0
      %724 = vmatmul.mubr.bf16.gmra.mxu0 %v415
      %v725 = vpop.f32.mrf.mxu0
      %v726 = vadd.f32 %v454, %v725
      %v727 = vpop.f32.mrf.mxu0
      %v728 = vadd.f32 %v458, %v727
      %v729 = vpop.f32.mrf.mxu0
      %v730 = vadd.f32 %v454, %v729
      %v731 = vpop.f32.mrf.mxu0
      %v732 = vadd.f32 %v458, %v731
      %733 = vmatprep.mubr.bf16.mxu0 0
      %734 = vmatmul.mubr.bf16.gmra.mxu0 %v416
      %v735 = vpop.f32.mrf.mxu0
      %v736 = vadd.f32 %v454, %v735
      %v737 = vpop.f32.mrf.mxu0
      %v738 = vadd.f32 %v458, %v737
      %v739 = vpop.f32.mrf.mxu0
      %v740 = vadd.f32 %v454, %v739
      %v741 = vpop.f32.mrf.mxu0
      %v742 = vadd.f32 %v458, %v741
      %743 = vdwg.mxu0
      %744 = vmatprep.subr.bf16.mxu0 %v598
      %745 = vmatpush1.bf16.msra.mxu0 %v597
      %746 = vmatprep.subr.bf16.mxu0 %v594
      %747 = vmatpush1.bf16.msra.mxu0 %v593
      %748 = vmatprep.subr.bf16.mxu0 %v590
      %749 = vmatpush1.bf16.msra.mxu0 %v589
      %750 = vmatprep.subr.bf16.mxu0 %v586
      %751 = vmatpush1.bf16.msra.mxu0 %v585
      %752 = vmatprep.subr.bf16.mxu0 %v582
      %753 = vmatpush1.bf16.msra.mxu0 %v581
      %754 = vmatprep.subr.bf16.mxu0 %v578
      %755 = vmatpush1.bf16.msra.mxu0 %v577
      %756 = vmatprep.subr.bf16.mxu0 %v574
      %757 = vmatpush1.bf16.msra.mxu0 %v573
      %758 = vmatprep.subr.bf16.mxu0 %v570
      %759 = vmatpush1.bf16.msra.mxu0 %v569
      %760 = vmatprep.subr.bf16.mxu0 0
      %761 = vmatpush2.bf16.msra.mxu0 0
      %762 = vmatprep.subr.bf16.mxu0 0
      %763 = vmatpush2.bf16.msra.mxu0 0
      %764 = vmatprep.subr.bf16.mxu0 0
      %765 = vmatpush2.bf16.msra.mxu0 0
      %766 = vmatprep.subr.bf16.mxu0 0
      %767 = vmatpush2.bf16.msra.mxu0 0
      %768 = vmatprep.subr.bf16.mxu0 0
      %769 = vmatpush2.bf16.msra.mxu0 0
      %770 = vmatprep.subr.bf16.mxu0 0
      %771 = vmatpush2.bf16.msra.mxu0 0
      %772 = vmatprep.subr.bf16.mxu0 0
      %773 = vmatpush2.bf16.msra.mxu0 0
      %774 = vmatprep.subr.bf16.mxu0 0
      %775 = vmatpush2.bf16.msra.mxu0 0
      %776 = vmatprep.mubr.bf16.mxu0 0
      %777 = vmatmul.mubr.bf16.gmra.mxu0 %v409
      %v778 = vpop.f32.mrf.mxu0
      %v779 = vadd.f32 %v462, %v778
      %v780 = vpop.f32.mrf.mxu0
      %v781 = vadd.f32 %v466, %v780
      %v782 = vpop.f32.mrf.mxu0
      %v783 = vadd.f32 %v462, %v782
      %v784 = vpop.f32.mrf.mxu0
      %v785 = vadd.f32 %v466, %v784
      %786 = vmatprep.mubr.bf16.mxu0 0
      %787 = vmatmul.mubr.bf16.gmra.mxu0 %v410
      %v788 = vpop.f32.mrf.mxu0
      %v789 = vadd.f32 %v462, %v788
      %v790 = vpop.f32.mrf.mxu0
      %v791 = vadd.f32 %v466, %v790
      %v792 = vpop.f32.mrf.mxu0
      %v793 = vadd.f32 %v462, %v792
      %v794 = vpop.f32.mrf.mxu0
      %v795 = vadd.f32 %v466, %v794
      %796 = vmatprep.mubr.bf16.mxu0 0
      %797 = vmatmul.mubr.bf16.gmra.mxu0 %v411
      %v798 = vpop.f32.mrf.mxu0
      %v799 = vadd.f32 %v462, %v798
      %v800 = vpop.f32.mrf.mxu0
      %v801 = vadd.f32 %v466, %v800
      %v802 = vpop.f32.mrf.mxu0
      %v803 = vadd.f32 %v462, %v802
      %v804 = vpop.f32.mrf.mxu0
      %v805 = vadd.f32 %v466, %v804
      %806 = vmatprep.mubr.bf16.mxu0 0
      %807 = vmatmul.mubr.bf16.gmra.mxu0 %v412
      %v808 = vpop.f32.mrf.mxu0
      %v809 = vadd.f32 %v462, %v808
      %v810 = vpop.f32.mrf.mxu0
      %v811 = vadd.f32 %v466, %v810
      %v812 = vpop.f32.mrf.mxu0
      %v813 = vadd.f32 %v462, %v812
      %v814 = vpop.f32.mrf.mxu0
      %v815 = vadd.f32 %v466, %v814
      %816 = vmatprep.mubr.bf16.mxu0 0
      %817 = vmatmul.mubr.bf16.gmra.mxu0 %v413
      %v818 = vpop.f32.mrf.mxu0
      %v819 = vadd.f32 %v462, %v818
      %v820 = vpop.f32.mrf.mxu0
      %v821 = vadd.f32 %v466, %v820
      %v822 = vpop.f32.mrf.mxu0
      %v823 = vadd.f32 %v462, %v822
      %v824 = vpop.f32.mrf.mxu0
      %v825 = vadd.f32 %v466, %v824
      %826 = vmatprep.mubr.bf16.mxu0 0
      %827 = vmatmul.mubr.bf16.gmra.mxu0 %v414
      %v828 = vpop.f32.mrf.mxu0
      %v829 = vadd.f32 %v462, %v828
      %v830 = vpop.f32.mrf.mxu0
      %v831 = vadd.f32 %v466, %v830
      %v832 = vpop.f32.mrf.mxu0
      %v833 = vadd.f32 %v462, %v832
      %v834 = vpop.f32.mrf.mxu0
      %v835 = vadd.f32 %v466, %v834
      %836 = vmatprep.mubr.bf16.mxu0 0
      %837 = vmatmul.mubr.bf16.gmra.mxu0 %v415
      %v838 = vpop.f32.mrf.mxu0
      %v839 = vadd.f32 %v462, %v838
      %v840 = vpop.f32.mrf.mxu0
      %v841 = vadd.f32 %v466, %v840
      %v842 = vpop.f32.mrf.mxu0
      %v843 = vadd.f32 %v462, %v842
      %v844 = vpop.f32.mrf.mxu0
      %v845 = vadd.f32 %v466, %v844
      %846 = vmatprep.mubr.bf16.mxu0 0
      %847 = vmatmul.mubr.bf16.gmra.mxu0 %v416
      %v848 = vpop.f32.mrf.mxu0
      %v849 = vadd.f32 %v462, %v848
      %v850 = vpop.f32.mrf.mxu0
      %v851 = vadd.f32 %v466, %v850
      %v852 = vpop.f32.mrf.mxu0
      %v853 = vadd.f32 %v462, %v852
      %v854 = vpop.f32.mrf.mxu0
      %v855 = vadd.f32 %v466, %v854
      %856 = vdwg.mxu0
      %s857 = sld [smem:[#allocation3]]
      %vm858 = vcmp.ge.f32.partialorder %v666, 0.0
      %vm859 = vcmp.ge.f32.partialorder %v668, 0.0
      %vm860 = vcmp.ge.f32.partialorder %v779, 0.0
      %vm861 = vcmp.ge.f32.partialorder %v781, 0.0
      %vm862 = vcmp.ge.f32.partialorder %v670, 0.0
      %vm863 = vcmp.ge.f32.partialorder %v672, 0.0
      %vm864 = vcmp.ge.f32.partialorder %v783, 0.0
      %vm865 = vcmp.ge.f32.partialorder %v785, 0.0
      %vm866 = vcmp.ge.f32.partialorder %v676, 0.0
      %vm867 = vcmp.ge.f32.partialorder %v678, 0.0
      %vm868 = vcmp.ge.f32.partialorder %v789, 0.0
      %vm869 = vcmp.ge.f32.partialorder %v791, 0.0
      %vm870 = vcmp.ge.f32.partialorder %v680, 0.0
      %vm871 = vcmp.ge.f32.partialorder %v682, 0.0
      %vm872 = vcmp.ge.f32.partialorder %v793, 0.0
      %vm873 = vcmp.ge.f32.partialorder %v795, 0.0
      %vm874 = vcmp.ge.f32.partialorder %v686, 0.0
      %vm875 = vcmp.ge.f32.partialorder %v688, 0.0
      %vm876 = vcmp.ge.f32.partialorder %v799, 0.0
      %vm877 = vcmp.ge.f32.partialorder %v801, 0.0
      %vm878 = vcmp.ge.f32.partialorder %v690, 0.0
      %vm879 = vcmp.ge.f32.partialorder %v692, 0.0
      %vm880 = vcmp.ge.f32.partialorder %v803, 0.0
      %vm881 = vcmp.ge.f32.partialorder %v805, 0.0
      %vm882 = vcmp.ge.f32.partialorder %v696, 0.0
      %vm883 = vcmp.ge.f32.partialorder %v698, 0.0
      %vm884 = vcmp.ge.f32.partialorder %v809, 0.0
      %vm885 = vcmp.ge.f32.partialorder %v811, 0.0
      %vm886 = vcmp.ge.f32.partialorder %v700, 0.0
      %vm887 = vcmp.ge.f32.partialorder %v702, 0.0
      %vm888 = vcmp.ge.f32.partialorder %v813, 0.0
      %vm889 = vcmp.ge.f32.partialorder %v815, 0.0
      %vm890 = vcmp.ge.f32.partialorder %v706, 0.0
      %vm891 = vcmp.ge.f32.partialorder %v708, 0.0
      %vm892 = vcmp.ge.f32.partialorder %v819, 0.0
      %vm893 = vcmp.ge.f32.partialorder %v821, 0.0
      %vm894 = vcmp.ge.f32.partialorder %v710, 0.0
      %vm895 = vcmp.ge.f32.partialorder %v712, 0.0
      %vm896 = vcmp.ge.f32.partialorder %v823, 0.0
      %vm897 = vcmp.ge.f32.partialorder %v825, 0.0
      %vm898 = vcmp.ge.f32.partialorder %v716, 0.0
      %vm899 = vcmp.ge.f32.partialorder %v718, 0.0
      %vm900 = vcmp.ge.f32.partialorder %v829, 0.0
      %vm901 = vcmp.ge.f32.partialorder %v831, 0.0
      %vm902 = vcmp.ge.f32.partialorder %v720, 0.0
      %vm903 = vcmp.ge.f32.partialorder %v722, 0.0
      %vm904 = vcmp.ge.f32.partialorder %v833, 0.0
      %vm905 = vcmp.ge.f32.partialorder %v835, 0.0
      %vm906 = vcmp.ge.f32.partialorder %v726, 0.0
      %vm907 = vcmp.ge.f32.partialorder %v728, 0.0
      %vm908 = vcmp.ge.f32.partialorder %v839, 0.0
      %vm909 = vcmp.ge.f32.partialorder %v841, 0.0
      %vm910 = vcmp.ge.f32.partialorder %v730, 0.0
      %vm911 = vcmp.ge.f32.partialorder %v732, 0.0
      %vm912 = vcmp.ge.f32.partialorder %v843, 0.0
      %vm913 = vcmp.ge.f32.partialorder %v845, 0.0
      %vm914 = vcmp.ge.f32.partialorder %v736, 0.0
      %vm915 = vcmp.ge.f32.partialorder %v738, 0.0
      %vm916 = vcmp.ge.f32.partialorder %v849, 0.0
      %vm917 = vcmp.ge.f32.partialorder %v851, 0.0
      %vm918 = vcmp.ge.f32.partialorder %v740, 0.0
      %vm919 = vcmp.ge.f32.partialorder %v742, 0.0
      %vm920 = vcmp.ge.f32.partialorder %v853, 0.0
      %vm921 = vcmp.ge.f32.partialorder %v855, 0.0
      %v922 = vstv %s857
      %v923 = vmul.f32 %v922, %v666
      %v924 = vmul.f32 %v922, %v668
      %v925 = vmul.f32 %v922, %v779
      %v926 = vmul.f32 %v922, %v781
      %v927 = vmul.f32 %v922, %v670
      %v928 = vmul.f32 %v922, %v672
      %v929 = vmul.f32 %v922, %v783
      %v930 = vmul.f32 %v922, %v785
      %v931 = vmul.f32 %v922, %v676
      %v932 = vmul.f32 %v922, %v678
      %v933 = vmul.f32 %v922, %v789
      %v934 = vmul.f32 %v922, %v791
      %v935 = vmul.f32 %v922, %v680
      %v936 = vmul.f32 %v922, %v682
      %v937 = vmul.f32 %v922, %v793
      %v938 = vmul.f32 %v922, %v795
      %v939 = vmul.f32 %v922, %v686
      %v940 = vmul.f32 %v922, %v688
      %v941 = vmul.f32 %v922, %v799
      %v942 = vmul.f32 %v922, %v801
      %v943 = vmul.f32 %v922, %v690
      %v944 = vmul.f32 %v922, %v692
      %v945 = vmul.f32 %v922, %v803
      %v946 = vmul.f32 %v922, %v805
      %v947 = vmul.f32 %v922, %v696
      %v948 = vmul.f32 %v922, %v698
      %v949 = vmul.f32 %v922, %v809
      %v950 = vmul.f32 %v922, %v811
      %v951 = vmul.f32 %v922, %v700
      %v952 = vmul.f32 %v922, %v702
      %v953 = vmul.f32 %v922, %v813
      %v954 = vmul.f32 %v922, %v815
      %v955 = vmul.f32 %v922, %v706
      %v956 = vmul.f32 %v922, %v708
      %v957 = vmul.f32 %v922, %v819
      %v958 = vmul.f32 %v922, %v821
      %v959 = vmul.f32 %v922, %v710
      %v960 = vmul.f32 %v922, %v712
      %v961 = vmul.f32 %v922, %v823
      %v962 = vmul.f32 %v922, %v825
      %v963 = vmul.f32 %v922, %v716
      %v964 = vmul.f32 %v922, %v718
      %v965 = vmul.f32 %v922, %v829
      %v966 = vmul.f32 %v922, %v831
      %v967 = vmul.f32 %v922, %v720
      %v968 = vmul.f32 %v922, %v722
      %v969 = vmul.f32 %v922, %v833
      %v970 = vmul.f32 %v922, %v835
      %v971 = vmul.f32 %v922, %v726
      %v972 = vmul.f32 %v922, %v728
      %v973 = vmul.f32 %v922, %v839
      %v974 = vmul.f32 %v922, %v841
      %v975 = vmul.f32 %v922, %v730
      %v976 = vmul.f32 %v922, %v732
      %v977 = vmul.f32 %v922, %v843
      %v978 = vmul.f32 %v922, %v845
      %v979 = vmul.f32 %v922, %v736
      %v980 = vmul.f32 %v922, %v738
      %v981 = vmul.f32 %v922, %v849
      %v982 = vmul.f32 %v922, %v851
      %v983 = vmul.f32 %v922, %v740
      %v984 = vmul.f32 %v922, %v742
      %v985 = vmul.f32 %v922, %v853
      %v986 = vmul.f32 %v922, %v855
      %v987 = vsel %vm858, %v666, %v923
      %v988 = vsel %vm859, %v668, %v924
      %v989 = vsel %vm860, %v779, %v925
      %v990 = vsel %vm861, %v781, %v926
      %v991 = vsel %vm862, %v670, %v927
      %v992 = vsel %vm863, %v672, %v928
      %v993 = vsel %vm864, %v783, %v929
      %v994 = vsel %vm865, %v785, %v930
      %v995 = vsel %vm866, %v676, %v931
      %v996 = vsel %vm867, %v678, %v932
      %v997 = vsel %vm868, %v789, %v933
      %v998 = vsel %vm869, %v791, %v934
      %v999 = vsel %vm870, %v680, %v935
      %v1000 = vsel %vm871, %v682, %v936
      %v1001 = vsel %vm872, %v793, %v937
      %v1002 = vsel %vm873, %v795, %v938
      %v1003 = vsel %vm874, %v686, %v939
      %v1004 = vsel %vm875, %v688, %v940
      %v1005 = vsel %vm876, %v799, %v941
      %v1006 = vsel %vm877, %v801, %v942
      %v1007 = vsel %vm878, %v690, %v943
      %v1008 = vsel %vm879, %v692, %v944
      %v1009 = vsel %vm880, %v803, %v945
      %v1010 = vsel %vm881, %v805, %v946
      %v1011 = vsel %vm882, %v696, %v947
      %v1012 = vsel %vm883, %v698, %v948
      %v1013 = vsel %vm884, %v809, %v949
      %v1014 = vsel %vm885, %v811, %v950
      %v1015 = vsel %vm886, %v700, %v951
      %v1016 = vsel %vm887, %v702, %v952
      %v1017 = vsel %vm888, %v813, %v953
      %v1018 = vsel %vm889, %v815, %v954
      %v1019 = vsel %vm890, %v706, %v955
      %v1020 = vsel %vm891, %v708, %v956
      %v1021 = vsel %vm892, %v819, %v957
      %v1022 = vsel %vm893, %v821, %v958
      %v1023 = vsel %vm894, %v710, %v959
      %v1024 = vsel %vm895, %v712, %v960
      %v1025 = vsel %vm896, %v823, %v961
      %v1026 = vsel %vm897, %v825, %v962
      %v1027 = vsel %vm898, %v716, %v963
      %v1028 = vsel %vm899, %v718, %v964
      %v1029 = vsel %vm900, %v829, %v965
      %v1030 = vsel %vm901, %v831, %v966
      %v1031 = vsel %vm902, %v720, %v967
      %v1032 = vsel %vm903, %v722, %v968
      %v1033 = vsel %vm904, %v833, %v969
      %v1034 = vsel %vm905, %v835, %v970
      %v1035 = vsel %vm906, %v726, %v971
      %v1036 = vsel %vm907, %v728, %v972
      %v1037 = vsel %vm908, %v839, %v973
      %v1038 = vsel %vm909, %v841, %v974
      %v1039 = vsel %vm910, %v730, %v975
      %v1040 = vsel %vm911, %v732, %v976
      %v1041 = vsel %vm912, %v843, %v977
      %v1042 = vsel %vm913, %v845, %v978
      %v1043 = vsel %vm914, %v736, %v979
      %v1044 = vsel %vm915, %v738, %v980
      %v1045 = vsel %vm916, %v849, %v981
      %v1046 = vsel %vm917, %v851, %v982
      %v1047 = vsel %vm918, %v740, %v983
      %v1048 = vsel %vm919, %v742, %v984
      %v1049 = vsel %vm920, %v853, %v985
      %v1050 = vsel %vm921, %v855, %v986
      %v1051 = vld [vmem:[#allocation12] sm:$0xff]
      %v1052 = vld [vmem:[#allocation12 + $0x8] sm:$0xff]
      %v1053 = vld [vmem:[#allocation12 + $0x10] sm:$0xff]
      %v1054 = vld [vmem:[#allocation12 + $0x18] sm:$0xff]
      %v1055 = vld [vmem:[#allocation12 + $0x20] sm:$0xff]
      %v1056 = vld [vmem:[#allocation12 + $0x28] sm:$0xff]
      %v1057 = vld [vmem:[#allocation12 + $0x30] sm:$0xff]
      %v1058 = vld [vmem:[#allocation12 + $0x38] sm:$0xff]
      %v1059 = vld [vmem:[#allocation12 + $0x40] sm:$0xff]
      %v1060 = vld [vmem:[#allocation12 + $0x48] sm:$0xff]
      %v1061 = vld [vmem:[#allocation12 + $0x50] sm:$0xff]
      %v1062 = vld [vmem:[#allocation12 + $0x58] sm:$0xff]
      %v1063 = vld [vmem:[#allocation12 + $0x60] sm:$0xff]
      %v1064 = vld [vmem:[#allocation12 + $0x68] sm:$0xff]
      %v1065 = vld [vmem:[#allocation12 + $0x70] sm:$0xff]
      %v1066 = vld [vmem:[#allocation12 + $0x78] sm:$0xff]
      %v1067 = vld [vmem:[#allocation12 + $0x80] sm:$0xff]
      %v1068 = vld [vmem:[#allocation12 + $0x88] sm:$0xff]
      %v1069 = vld [vmem:[#allocation12 + $0x90] sm:$0xff]
      %v1070 = vld [vmem:[#allocation12 + $0x98] sm:$0xff]
      %v1071 = vld [vmem:[#allocation12 + $0xa0] sm:$0xff]
      %v1072 = vld [vmem:[#allocation12 + $0xa8] sm:$0xff]
      %v1073 = vld [vmem:[#allocation12 + $0xb0] sm:$0xff]
      %v1074 = vld [vmem:[#allocation12 + $0xb8] sm:$0xff]
      %v1075 = vld [vmem:[#allocation12 + $0xc0] sm:$0xff]
      %v1076 = vld [vmem:[#allocation12 + $0xc8] sm:$0xff]
      %v1077 = vld [vmem:[#allocation12 + $0xd0] sm:$0xff]
      %v1078 = vld [vmem:[#allocation12 + $0xd8] sm:$0xff]
      %v1079 = vld [vmem:[#allocation12 + $0xe0] sm:$0xff]
      %v1080 = vld [vmem:[#allocation12 + $0xe8] sm:$0xff]
      %v1081 = vld [vmem:[#allocation12 + $0xf0] sm:$0xff]
      %v1082 = vld [vmem:[#allocation12 + $0xf8] sm:$0xff]
      %v1083 = vunpack.c.l.bf16 %v1051
      %v1084 = vunpack.c.h.bf16 %v1051
      %v1085 = vunpack.c.l.bf16 %v1052
      %v1086 = vunpack.c.h.bf16 %v1052
      %v1087 = vunpack.c.l.bf16 %v1053
      %v1088 = vunpack.c.h.bf16 %v1053
      %v1089 = vunpack.c.l.bf16 %v1054
      %v1090 = vunpack.c.h.bf16 %v1054
      %v1091 = vunpack.c.l.bf16 %v1055
      %v1092 = vunpack.c.h.bf16 %v1055
      %v1093 = vunpack.c.l.bf16 %v1056
      %v1094 = vunpack.c.h.bf16 %v1056
      %v1095 = vunpack.c.l.bf16 %v1057
      %v1096 = vunpack.c.h.bf16 %v1057
      %v1097 = vunpack.c.l.bf16 %v1058
      %v1098 = vunpack.c.h.bf16 %v1058
      %v1099 = vunpack.c.l.bf16 %v1059
      %v1100 = vunpack.c.h.bf16 %v1059
      %v1101 = vunpack.c.l.bf16 %v1060
      %v1102 = vunpack.c.h.bf16 %v1060
      %v1103 = vunpack.c.l.bf16 %v1061
      %v1104 = vunpack.c.h.bf16 %v1061
      %v1105 = vunpack.c.l.bf16 %v1062
      %v1106 = vunpack.c.h.bf16 %v1062
      %v1107 = vunpack.c.l.bf16 %v1063
      %v1108 = vunpack.c.h.bf16 %v1063
      %v1109 = vunpack.c.l.bf16 %v1064
      %v1110 = vunpack.c.h.bf16 %v1064
      %v1111 = vunpack.c.l.bf16 %v1065
      %v1112 = vunpack.c.h.bf16 %v1065
      %v1113 = vunpack.c.l.bf16 %v1066
      %v1114 = vunpack.c.h.bf16 %v1066
      %v1115 = vunpack.c.l.bf16 %v1067
      %v1116 = vunpack.c.h.bf16 %v1067
      %v1117 = vunpack.c.l.bf16 %v1068
      %v1118 = vunpack.c.h.bf16 %v1068
      %v1119 = vunpack.c.l.bf16 %v1069
      %v1120 = vunpack.c.h.bf16 %v1069
      %v1121 = vunpack.c.l.bf16 %v1070
      %v1122 = vunpack.c.h.bf16 %v1070
      %v1123 = vunpack.c.l.bf16 %v1071
      %v1124 = vunpack.c.h.bf16 %v1071
      %v1125 = vunpack.c.l.bf16 %v1072
      %v1126 = vunpack.c.h.bf16 %v1072
      %v1127 = vunpack.c.l.bf16 %v1073
      %v1128 = vunpack.c.h.bf16 %v1073
      %v1129 = vunpack.c.l.bf16 %v1074
      %v1130 = vunpack.c.h.bf16 %v1074
      %v1131 = vunpack.c.l.bf16 %v1075
      %v1132 = vunpack.c.h.bf16 %v1075
      %v1133 = vunpack.c.l.bf16 %v1076
      %v1134 = vunpack.c.h.bf16 %v1076
      %v1135 = vunpack.c.l.bf16 %v1077
      %v1136 = vunpack.c.h.bf16 %v1077
      %v1137 = vunpack.c.l.bf16 %v1078
      %v1138 = vunpack.c.h.bf16 %v1078
      %v1139 = vunpack.c.l.bf16 %v1079
      %v1140 = vunpack.c.h.bf16 %v1079
      %v1141 = vunpack.c.l.bf16 %v1080
      %v1142 = vunpack.c.h.bf16 %v1080
      %v1143 = vunpack.c.l.bf16 %v1081
      %v1144 = vunpack.c.h.bf16 %v1081
      %v1145 = vunpack.c.l.bf16 %v1082
      %v1146 = vunpack.c.h.bf16 %v1082
      %v1147 = vmul.f32 %v987, %v1083
      %v1148 = vmul.f32 %v988, %v1084
      %v1149 = vmul.f32 %v989, %v1085
      %v1150 = vmul.f32 %v990, %v1086
      %v1151 = vmul.f32 %v991, %v1087
      %v1152 = vmul.f32 %v992, %v1088
      %v1153 = vmul.f32 %v993, %v1089
      %v1154 = vmul.f32 %v994, %v1090
      %v1155 = vmul.f32 %v995, %v1091
      %v1156 = vmul.f32 %v996, %v1092
      %v1157 = vmul.f32 %v997, %v1093
      %v1158 = vmul.f32 %v998, %v1094
      %v1159 = vmul.f32 %v999, %v1095
      %v1160 = vmul.f32 %v1000, %v1096
      %v1161 = vmul.f32 %v1001, %v1097
      %v1162 = vmul.f32 %v1002, %v1098
      %v1163 = vmul.f32 %v1003, %v1099
      %v1164 = vmul.f32 %v1004, %v1100
      %v1165 = vmul.f32 %v1005, %v1101
      %v1166 = vmul.f32 %v1006, %v1102
      %v1167 = vmul.f32 %v1007, %v1103
      %v1168 = vmul.f32 %v1008, %v1104
      %v1169 = vmul.f32 %v1009, %v1105
      %v1170 = vmul.f32 %v1010, %v1106
      %v1171 = vmul.f32 %v1011, %v1107
      %v1172 = vmul.f32 %v1012, %v1108
      %v1173 = vmul.f32 %v1013, %v1109
      %v1174 = vmul.f32 %v1014, %v1110
      %v1175 = vmul.f32 %v1015, %v1111
      %v1176 = vmul.f32 %v1016, %v1112
      %v1177 = vmul.f32 %v1017, %v1113
      %v1178 = vmul.f32 %v1018, %v1114
      %v1179 = vmul.f32 %v1019, %v1115
      %v1180 = vmul.f32 %v1020, %v1116
      %v1181 = vmul.f32 %v1021, %v1117
      %v1182 = vmul.f32 %v1022, %v1118
      %v1183 = vmul.f32 %v1023, %v1119
      %v1184 = vmul.f32 %v1024, %v1120
      %v1185 = vmul.f32 %v1025, %v1121
      %v1186 = vmul.f32 %v1026, %v1122
      %v1187 = vmul.f32 %v1027, %v1123
      %v1188 = vmul.f32 %v1028, %v1124
      %v1189 = vmul.f32 %v1029, %v1125
      %v1190 = vmul.f32 %v1030, %v1126
      %v1191 = vmul.f32 %v1031, %v1127
      %v1192 = vmul.f32 %v1032, %v1128
      %v1193 = vmul.f32 %v1033, %v1129
      %v1194 = vmul.f32 %v1034, %v1130
      %v1195 = vmul.f32 %v1035, %v1131
      %v1196 = vmul.f32 %v1036, %v1132
      %v1197 = vmul.f32 %v1037, %v1133
      %v1198 = vmul.f32 %v1038, %v1134
      %v1199 = vmul.f32 %v1039, %v1135
      %v1200 = vmul.f32 %v1040, %v1136
      %v1201 = vmul.f32 %v1041, %v1137
      %v1202 = vmul.f32 %v1042, %v1138
      %v1203 = vmul.f32 %v1043, %v1139
      %v1204 = vmul.f32 %v1044, %v1140
      %v1205 = vmul.f32 %v1045, %v1141
      %v1206 = vmul.f32 %v1046, %v1142
      %v1207 = vmul.f32 %v1047, %v1143
      %v1208 = vmul.f32 %v1048, %v1144
      %v1209 = vmul.f32 %v1049, %v1145
      %v1210 = vmul.f32 %v1050, %v1146
      %v1211 = vpack.c.bf16 %v1151, %v1147
      %v1212 = vpack.c.bf16 %v1152, %v1148
      %v1213 = vpack.c.bf16 %v1153, %v1149
      %v1214 = vpack.c.bf16 %v1154, %v1150
      %v1215 = vpack.c.bf16 %v1159, %v1155
      %v1216 = vpack.c.bf16 %v1160, %v1156
      %v1217 = vpack.c.bf16 %v1161, %v1157
      %v1218 = vpack.c.bf16 %v1162, %v1158
      %v1219 = vpack.c.bf16 %v1167, %v1163
      %v1220 = vpack.c.bf16 %v1168, %v1164
      %v1221 = vpack.c.bf16 %v1169, %v1165
      %v1222 = vpack.c.bf16 %v1170, %v1166
      %v1223 = vpack.c.bf16 %v1175, %v1171
      %v1224 = vpack.c.bf16 %v1176, %v1172
      %v1225 = vpack.c.bf16 %v1177, %v1173
      %v1226 = vpack.c.bf16 %v1178, %v1174
      %v1227 = vpack.c.bf16 %v1183, %v1179
      %v1228 = vpack.c.bf16 %v1184, %v1180
      %v1229 = vpack.c.bf16 %v1185, %v1181
      %v1230 = vpack.c.bf16 %v1186, %v1182
      %v1231 = vpack.c.bf16 %v1191, %v1187
      %v1232 = vpack.c.bf16 %v1192, %v1188
      %v1233 = vpack.c.bf16 %v1193, %v1189
      %v1234 = vpack.c.bf16 %v1194, %v1190
      %v1235 = vpack.c.bf16 %v1199, %v1195
      %v1236 = vpack.c.bf16 %v1200, %v1196
      %v1237 = vpack.c.bf16 %v1201, %v1197
      %v1238 = vpack.c.bf16 %v1202, %v1198
      %v1239 = vpack.c.bf16 %v1207, %v1203
      %v1240 = vpack.c.bf16 %v1208, %v1204
      %v1241 = vpack.c.bf16 %v1209, %v1205
      %v1242 = vpack.c.bf16 %v1210, %v1206
      %v1243 = vld [vmem:[#allocation10] sm:$0xf]
      %v1244 = vld [vmem:[#allocation10 + $0x4] sm:$0xf]
      %v1245 = vld [vmem:[#allocation10 + $0x8] sm:$0xf]
      %v1246 = vld [vmem:[#allocation10 + $0xc] sm:$0xf]
      %v1247 = vld [vmem:[#allocation10 + $0x10] sm:$0xf]
      %v1248 = vld [vmem:[#allocation10 + $0x14] sm:$0xf]
      %v1249 = vld [vmem:[#allocation10 + $0x18] sm:$0xf]
      %v1250 = vld [vmem:[#allocation10 + $0x1c] sm:$0xf]
      %v1251 = vld [vmem:[#allocation10 + $0x20] sm:$0xf]
      %v1252 = vld [vmem:[#allocation10 + $0x24] sm:$0xf]
      %v1253 = vld [vmem:[#allocation10 + $0x28] sm:$0xf]
      %v1254 = vld [vmem:[#allocation10 + $0x2c] sm:$0xf]
      %v1255 = vld [vmem:[#allocation10 + $0x30] sm:$0xf]
      %v1256 = vld [vmem:[#allocation10 + $0x34] sm:$0xf]
      %v1257 = vld [vmem:[#allocation10 + $0x38] sm:$0xf]
      %v1258 = vld [vmem:[#allocation10 + $0x3c] sm:$0xf]
      %v1259 = vld [vmem:[#allocation10 + $0x40] sm:$0xf]
      %v1260 = vld [vmem:[#allocation10 + $0x44] sm:$0xf]
      %v1261 = vld [vmem:[#allocation10 + $0x48] sm:$0xf]
      %v1262 = vld [vmem:[#allocation10 + $0x4c] sm:$0xf]
      %v1263 = vld [vmem:[#allocation10 + $0x50] sm:$0xf]
      %v1264 = vld [vmem:[#allocation10 + $0x54] sm:$0xf]
      %v1265 = vld [vmem:[#allocation10 + $0x58] sm:$0xf]
      %v1266 = vld [vmem:[#allocation10 + $0x5c] sm:$0xf]
      %v1267 = vld [vmem:[#allocation10 + $0x60] sm:$0xf]
      %v1268 = vld [vmem:[#allocation10 + $0x64] sm:$0xf]
      %v1269 = vld [vmem:[#allocation10 + $0x68] sm:$0xf]
      %v1270 = vld [vmem:[#allocation10 + $0x6c] sm:$0xf]
      %v1271 = vld [vmem:[#allocation10 + $0x70] sm:$0xf]
      %v1272 = vld [vmem:[#allocation10 + $0x74] sm:$0xf]
      %v1273 = vld [vmem:[#allocation10 + $0x78] sm:$0xf]
      %v1274 = vld [vmem:[#allocation10 + $0x7c] sm:$0xf]
      %v1275 = vld [vmem:[#allocation10 + $0x80] sm:$0xf]
      %v1276 = vld [vmem:[#allocation10 + $0x84] sm:$0xf]
      %v1277 = vld [vmem:[#allocation10 + $0x88] sm:$0xf]
      %v1278 = vld [vmem:[#allocation10 + $0x8c] sm:$0xf]
      %v1279 = vld [vmem:[#allocation10 + $0x90] sm:$0xf]
      %v1280 = vld [vmem:[#allocation10 + $0x94] sm:$0xf]
      %v1281 = vld [vmem:[#allocation10 + $0x98] sm:$0xf]
      %v1282 = vld [vmem:[#allocation10 + $0x9c] sm:$0xf]
      %v1283 = vld [vmem:[#allocation10 + $0xa0] sm:$0xf]
      %v1284 = vld [vmem:[#allocation10 + $0xa4] sm:$0xf]
      %v1285 = vld [vmem:[#allocation10 + $0xa8] sm:$0xf]
      %v1286 = vld [vmem:[#allocation10 + $0xac] sm:$0xf]
      %v1287 = vld [vmem:[#allocation10 + $0xb0] sm:$0xf]
      %v1288 = vld [vmem:[#allocation10 + $0xb4] sm:$0xf]
      %v1289 = vld [vmem:[#allocation10 + $0xb8] sm:$0xf]
      %v1290 = vld [vmem:[#allocation10 + $0xbc] sm:$0xf]
      %v1291 = vld [vmem:[#allocation10 + $0xc0] sm:$0xf]
      %v1292 = vld [vmem:[#allocation10 + $0xc4] sm:$0xf]
      %v1293 = vld [vmem:[#allocation10 + $0xc8] sm:$0xf]
      %v1294 = vld [vmem:[#allocation10 + $0xcc] sm:$0xf]
      %v1295 = vld [vmem:[#allocation10 + $0xd0] sm:$0xf]
      %v1296 = vld [vmem:[#allocation10 + $0xd4] sm:$0xf]
      %v1297 = vld [vmem:[#allocation10 + $0xd8] sm:$0xf]
      %v1298 = vld [vmem:[#allocation10 + $0xdc] sm:$0xf]
      %v1299 = vld [vmem:[#allocation10 + $0xe0] sm:$0xf]
      %v1300 = vld [vmem:[#allocation10 + $0xe4] sm:$0xf]
      %v1301 = vld [vmem:[#allocation10 + $0xe8] sm:$0xf]
      %v1302 = vld [vmem:[#allocation10 + $0xec] sm:$0xf]
      %v1303 = vld [vmem:[#allocation10 + $0xf0] sm:$0xf]
      %v1304 = vld [vmem:[#allocation10 + $0xf4] sm:$0xf]
      %v1305 = vld [vmem:[#allocation10 + $0xf8] sm:$0xf]
      %v1306 = vld [vmem:[#allocation10 + $0xfc] sm:$0xf]
      %v1371 = vunpack.c.l.b16 %v1243
      %v1372 = vunpack.c.l.b16 %v1244
      %v1373 = vunpack.c.l.b16 %v1245
      %v1374 = vunpack.c.l.b16 %v1246
      %v1375 = vunpack.c.l.b16 %v1247
      %v1376 = vunpack.c.l.b16 %v1248
      %v1377 = vunpack.c.l.b16 %v1249
      %v1378 = vunpack.c.l.b16 %v1250
      %v1379 = vunpack.c.l.b16 %v1251
      %v1380 = vunpack.c.l.b16 %v1252
      %v1381 = vunpack.c.l.b16 %v1253
      %v1382 = vunpack.c.l.b16 %v1254
      %v1383 = vunpack.c.l.b16 %v1255
      %v1384 = vunpack.c.l.b16 %v1256
      %v1385 = vunpack.c.l.b16 %v1257
      %v1386 = vunpack.c.l.b16 %v1258
      %v1387 = vunpack.c.l.b16 %v1259
      %v1388 = vunpack.c.l.b16 %v1260
      %v1389 = vunpack.c.l.b16 %v1261
      %v1390 = vunpack.c.l.b16 %v1262
      %v1391 = vunpack.c.l.b16 %v1263
      %v1392 = vunpack.c.l.b16 %v1264
      %v1393 = vunpack.c.l.b16 %v1265
      %v1394 = vunpack.c.l.b16 %v1266
      %v1395 = vunpack.c.l.b16 %v1267
      %v1396 = vunpack.c.l.b16 %v1268
      %v1397 = vunpack.c.l.b16 %v1269
      %v1398 = vunpack.c.l.b16 %v1270
      %v1399 = vunpack.c.l.b16 %v1271
      %v1400 = vunpack.c.l.b16 %v1272
      %v1401 = vunpack.c.l.b16 %v1273
      %v1402 = vunpack.c.l.b16 %v1274
      %v1403 = vunpack.c.l.b16 %v1275
      %v1404 = vunpack.c.l.b16 %v1276
      %v1405 = vunpack.c.l.b16 %v1277
      %v1406 = vunpack.c.l.b16 %v1278
      %v1407 = vunpack.c.l.b16 %v1279
      %v1408 = vunpack.c.l.b16 %v1280
      %v1409 = vunpack.c.l.b16 %v1281
      %v1410 = vunpack.c.l.b16 %v1282
      %v1411 = vunpack.c.l.b16 %v1283
      %v1412 = vunpack.c.l.b16 %v1284
      %v1413 = vunpack.c.l.b16 %v1285
      %v1414 = vunpack.c.l.b16 %v1286
      %v1415 = vunpack.c.l.b16 %v1287
      %v1416 = vunpack.c.l.b16 %v1288
      %v1417 = vunpack.c.l.b16 %v1289
      %v1418 = vunpack.c.l.b16 %v1290
      %v1419 = vunpack.c.l.b16 %v1291
      %v1420 = vunpack.c.l.b16 %v1292
      %v1421 = vunpack.c.l.b16 %v1293
      %v1422 = vunpack.c.l.b16 %v1294
      %v1423 = vunpack.c.l.b16 %v1295
      %v1424 = vunpack.c.l.b16 %v1296
      %v1425 = vunpack.c.l.b16 %v1297
      %v1426 = vunpack.c.l.b16 %v1298
      %v1427 = vunpack.c.l.b16 %v1299
      %v1428 = vunpack.c.l.b16 %v1300
      %v1429 = vunpack.c.l.b16 %v1301
      %v1430 = vunpack.c.l.b16 %v1302
      %v1431 = vunpack.c.l.b16 %v1303
      %v1432 = vunpack.c.l.b16 %v1304
      %v1433 = vunpack.c.l.b16 %v1305
      %v1434 = vunpack.c.l.b16 %v1306
      %v1435 = vpack.c.b16 %v1372, %v1371
      %v1436 = vpack.c.b16 %v1374, %v1373
      %v1437 = vpack.c.b16 %v1376, %v1375
      %v1438 = vpack.c.b16 %v1378, %v1377
      %v1439 = vpack.c.b16 %v1380, %v1379
      %v1440 = vpack.c.b16 %v1382, %v1381
      %v1441 = vpack.c.b16 %v1384, %v1383
      %v1442 = vpack.c.b16 %v1386, %v1385
      %v1443 = vpack.c.b16 %v1388, %v1387
      %v1444 = vpack.c.b16 %v1390, %v1389
      %v1445 = vpack.c.b16 %v1392, %v1391
      %v1446 = vpack.c.b16 %v1394, %v1393
      %v1447 = vpack.c.b16 %v1396, %v1395
      %v1448 = vpack.c.b16 %v1398, %v1397
      %v1449 = vpack.c.b16 %v1400, %v1399
      %v1450 = vpack.c.b16 %v1402, %v1401
      %v1451 = vpack.c.b16 %v1404, %v1403
      %v1452 = vpack.c.b16 %v1406, %v1405
      %v1453 = vpack.c.b16 %v1408, %v1407
      %v1454 = vpack.c.b16 %v1410, %v1409
      %v1455 = vpack.c.b16 %v1412, %v1411
      %v1456 = vpack.c.b16 %v1414, %v1413
      %v1457 = vpack.c.b16 %v1416, %v1415
      %v1458 = vpack.c.b16 %v1418, %v1417
      %v1459 = vpack.c.b16 %v1420, %v1419
      %v1460 = vpack.c.b16 %v1422, %v1421
      %v1461 = vpack.c.b16 %v1424, %v1423
      %v1462 = vpack.c.b16 %v1426, %v1425
      %v1463 = vpack.c.b16 %v1428, %v1427
      %v1464 = vpack.c.b16 %v1430, %v1429
      %v1465 = vpack.c.b16 %v1432, %v1431
      %v1466 = vpack.c.b16 %v1434, %v1433
      %1499 = vmatprep.subr.bf16.mxu0 0
      %1500 = vmatpush1.bf16.msra.mxu0 %v1442
      %1501 = vmatprep.subr.bf16.mxu0 0
      %1502 = vmatpush1.bf16.msra.mxu0 %v1441
      %1503 = vmatprep.subr.bf16.mxu0 0
      %1504 = vmatpush1.bf16.msra.mxu0 %v1440
      %1505 = vmatprep.subr.bf16.mxu0 0
      %1506 = vmatpush1.bf16.msra.mxu0 %v1439
      %1507 = vmatprep.subr.bf16.mxu0 0
      %1508 = vmatpush1.bf16.msra.mxu0 %v1438
      %1509 = vmatprep.subr.bf16.mxu0 0
      %1510 = vmatpush1.bf16.msra.mxu0 %v1437
      %1511 = vmatprep.subr.bf16.mxu0 0
      %1512 = vmatpush1.bf16.msra.mxu0 %v1436
      %1513 = vmatprep.subr.bf16.mxu0 0
      %1514 = vmatpush1.bf16.msra.mxu0 %v1435
      %1515 = vmatprep.subr.bf16.mxu0 0
      %1516 = vmatpush2.bf16.msra.mxu0 %v1450
      %1517 = vmatprep.subr.bf16.mxu0 0
      %1518 = vmatpush2.bf16.msra.mxu0 %v1449
      %1519 = vmatprep.subr.bf16.mxu0 0
      %1520 = vmatpush2.bf16.msra.mxu0 %v1448
      %1521 = vmatprep.subr.bf16.mxu0 0
      %1522 = vmatpush2.bf16.msra.mxu0 %v1447
      %1523 = vmatprep.subr.bf16.mxu0 0
      %1524 = vmatpush2.bf16.msra.mxu0 %v1446
      %1525 = vmatprep.subr.bf16.mxu0 0
      %1526 = vmatpush2.bf16.msra.mxu0 %v1445
      %1527 = vmatprep.subr.bf16.mxu0 0
      %1528 = vmatpush2.bf16.msra.mxu0 %v1444
      %1529 = vmatprep.subr.bf16.mxu0 0
      %1530 = vmatpush2.bf16.msra.mxu0 %v1443
      %1531 = vmatprep.mubr.bf16.mxu0 %v1212
      %1532 = vmatmul.mubr.bf16.gmra.mxu0 %v1211
      %v1533 = vpop.f32.mrf.mxu0
      %v1534 = vadd.f32 0.0, %v1533
      %v1535 = vpop.f32.mrf.mxu0
      %v1536 = vpop.f32.mrf.mxu0
      %v1537 = vadd.f32 0.0, %v1536
      %v1538 = vpop.f32.mrf.mxu0
      %1539 = vmatprep.mubr.bf16.mxu0 %v1216
      %1540 = vmatmul.mubr.bf16.gmra.mxu0 %v1215
      %v1541 = vpop.f32.mrf.mxu0
      %v1542 = vadd.f32 0.0, %v1541
      %v1543 = vpop.f32.mrf.mxu0
      %v1544 = vpop.f32.mrf.mxu0
      %v1545 = vadd.f32 0.0, %v1544
      %v1546 = vpop.f32.mrf.mxu0
      %1547 = vmatprep.mubr.bf16.mxu0 %v1220
      %1548 = vmatmul.mubr.bf16.gmra.mxu0 %v1219
      %v1549 = vpop.f32.mrf.mxu0
      %v1550 = vadd.f32 0.0, %v1549
      %v1551 = vpop.f32.mrf.mxu0
      %v1552 = vpop.f32.mrf.mxu0
      %v1553 = vadd.f32 0.0, %v1552
      %v1554 = vpop.f32.mrf.mxu0
      %1555 = vmatprep.mubr.bf16.mxu0 %v1224
      %1556 = vmatmul.mubr.bf16.gmra.mxu0 %v1223
      %v1557 = vpop.f32.mrf.mxu0
      %v1558 = vadd.f32 0.0, %v1557
      %v1559 = vpop.f32.mrf.mxu0
      %v1560 = vpop.f32.mrf.mxu0
      %v1561 = vadd.f32 0.0, %v1560
      %v1562 = vpop.f32.mrf.mxu0
      %1563 = vmatprep.mubr.bf16.mxu0 %v1228
      %1564 = vmatmul.mubr.bf16.gmra.mxu0 %v1227
      %v1565 = vpop.f32.mrf.mxu0
      %v1566 = vadd.f32 0.0, %v1565
      %v1567 = vpop.f32.mrf.mxu0
      %v1568 = vpop.f32.mrf.mxu0
      %v1569 = vadd.f32 0.0, %v1568
      %v1570 = vpop.f32.mrf.mxu0
      %1571 = vmatprep.mubr.bf16.mxu0 %v1232
      %1572 = vmatmul.mubr.bf16.gmra.mxu0 %v1231
      %v1573 = vpop.f32.mrf.mxu0
      %v1574 = vadd.f32 0.0, %v1573
      %v1575 = vpop.f32.mrf.mxu0
      %v1576 = vpop.f32.mrf.mxu0
      %v1577 = vadd.f32 0.0, %v1576
      %v1578 = vpop.f32.mrf.mxu0
      %1579 = vmatprep.mubr.bf16.mxu0 %v1236
      %1580 = vmatmul.mubr.bf16.gmra.mxu0 %v1235
      %v1581 = vpop.f32.mrf.mxu0
      %v1582 = vadd.f32 0.0, %v1581
      %v1583 = vpop.f32.mrf.mxu0
      %v1584 = vpop.f32.mrf.mxu0
      %v1585 = vadd.f32 0.0, %v1584
      %v1586 = vpop.f32.mrf.mxu0
      %1587 = vmatprep.mubr.bf16.mxu0 %v1240
      %1588 = vmatmul.mubr.bf16.gmra.mxu0 %v1239
      %v1589 = vpop.f32.mrf.mxu0
      %v1590 = vadd.f32 0.0, %v1589
      %v1591 = vpop.f32.mrf.mxu0
      %v1592 = vpop.f32.mrf.mxu0
      %v1593 = vadd.f32 0.0, %v1592
      %v1594 = vpop.f32.mrf.mxu0
      %1595 = vdwg.mxu0
      %1596 = vmatprep.subr.bf16.mxu0 0
      %1597 = vmatpush1.bf16.msra.mxu0 %v1458
      %1598 = vmatprep.subr.bf16.mxu0 0
      %1599 = vmatpush1.bf16.msra.mxu0 %v1457
      %1600 = vmatprep.subr.bf16.mxu0 0
      %1601 = vmatpush1.bf16.msra.mxu0 %v1456
      %1602 = vmatprep.subr.bf16.mxu0 0
      %1603 = vmatpush1.bf16.msra.mxu0 %v1455
      %1604 = vmatprep.subr.bf16.mxu0 0
      %1605 = vmatpush1.bf16.msra.mxu0 %v1454
      %1606 = vmatprep.subr.bf16.mxu0 0
      %1607 = vmatpush1.bf16.msra.mxu0 %v1453
      %1608 = vmatprep.subr.bf16.mxu0 0
      %1609 = vmatpush1.bf16.msra.mxu0 %v1452
      %1610 = vmatprep.subr.bf16.mxu0 0
      %1611 = vmatpush1.bf16.msra.mxu0 %v1451
      %1612 = vmatprep.subr.bf16.mxu0 0
      %1613 = vmatpush2.bf16.msra.mxu0 %v1466
      %1614 = vmatprep.subr.bf16.mxu0 0
      %1615 = vmatpush2.bf16.msra.mxu0 %v1465
      %1616 = vmatprep.subr.bf16.mxu0 0
      %1617 = vmatpush2.bf16.msra.mxu0 %v1464
      %1618 = vmatprep.subr.bf16.mxu0 0
      %1619 = vmatpush2.bf16.msra.mxu0 %v1463
      %1620 = vmatprep.subr.bf16.mxu0 0
      %1621 = vmatpush2.bf16.msra.mxu0 %v1462
      %1622 = vmatprep.subr.bf16.mxu0 0
      %1623 = vmatpush2.bf16.msra.mxu0 %v1461
      %1624 = vmatprep.subr.bf16.mxu0 0
      %1625 = vmatpush2.bf16.msra.mxu0 %v1460
      %1626 = vmatprep.subr.bf16.mxu0 0
      %1627 = vmatpush2.bf16.msra.mxu0 %v1459
      %1628 = vmatprep.mubr.bf16.mxu0 %v1214
      %1629 = vmatmul.mubr.bf16.gmra.mxu0 %v1213
      %v1630 = vpop.f32.mrf.mxu0
      %v1631 = vadd.f32 %v1534, %v1630
      %v1632 = vpop.f32.mrf.mxu0
      %v1633 = vpop.f32.mrf.mxu0
      %v1634 = vadd.f32 %v1537, %v1633
      %v1635 = vpop.f32.mrf.mxu0
      %1636 = vmatprep.mubr.bf16.mxu0 %v1218
      %1637 = vmatmul.mubr.bf16.gmra.mxu0 %v1217
      %v1638 = vpop.f32.mrf.mxu0
      %v1639 = vadd.f32 %v1542, %v1638
      %v1640 = vpop.f32.mrf.mxu0
      %v1641 = vpop.f32.mrf.mxu0
      %v1642 = vadd.f32 %v1545, %v1641
      %v1643 = vpop.f32.mrf.mxu0
      %1644 = vmatprep.mubr.bf16.mxu0 %v1222
      %1645 = vmatmul.mubr.bf16.gmra.mxu0 %v1221
      %v1646 = vpop.f32.mrf.mxu0
      %v1647 = vadd.f32 %v1550, %v1646
      %v1648 = vpop.f32.mrf.mxu0
      %v1649 = vpop.f32.mrf.mxu0
      %v1650 = vadd.f32 %v1553, %v1649
      %v1651 = vpop.f32.mrf.mxu0
      %1652 = vmatprep.mubr.bf16.mxu0 %v1226
      %1653 = vmatmul.mubr.bf16.gmra.mxu0 %v1225
      %v1654 = vpop.f32.mrf.mxu0
      %v1655 = vadd.f32 %v1558, %v1654
      %v1656 = vpop.f32.mrf.mxu0
      %v1657 = vpop.f32.mrf.mxu0
      %v1658 = vadd.f32 %v1561, %v1657
      %v1659 = vpop.f32.mrf.mxu0
      %1660 = vmatprep.mubr.bf16.mxu0 %v1230
      %1661 = vmatmul.mubr.bf16.gmra.mxu0 %v1229
      %v1662 = vpop.f32.mrf.mxu0
      %v1663 = vadd.f32 %v1566, %v1662
      %v1664 = vpop.f32.mrf.mxu0
      %v1665 = vpop.f32.mrf.mxu0
      %v1666 = vadd.f32 %v1569, %v1665
      %v1667 = vpop.f32.mrf.mxu0
      %1668 = vmatprep.mubr.bf16.mxu0 %v1234
      %1669 = vmatmul.mubr.bf16.gmra.mxu0 %v1233
      %v1670 = vpop.f32.mrf.mxu0
      %v1671 = vadd.f32 %v1574, %v1670
      %v1672 = vpop.f32.mrf.mxu0
      %v1673 = vpop.f32.mrf.mxu0
      %v1674 = vadd.f32 %v1577, %v1673
      %v1675 = vpop.f32.mrf.mxu0
      %1676 = vmatprep.mubr.bf16.mxu0 %v1238
      %1677 = vmatmul.mubr.bf16.gmra.mxu0 %v1237
      %v1678 = vpop.f32.mrf.mxu0
      %v1679 = vadd.f32 %v1582, %v1678
      %v1680 = vpop.f32.mrf.mxu0
      %v1681 = vpop.f32.mrf.mxu0
      %v1682 = vadd.f32 %v1585, %v1681
      %v1683 = vpop.f32.mrf.mxu0
      %1684 = vmatprep.mubr.bf16.mxu0 %v1242
      %1685 = vmatmul.mubr.bf16.gmra.mxu0 %v1241
      %v1686 = vpop.f32.mrf.mxu0
      %v1687 = vadd.f32 %v1590, %v1686
      %v1688 = vpop.f32.mrf.mxu0
      %v1689 = vpop.f32.mrf.mxu0
      %v1690 = vadd.f32 %v1593, %v1689
      %v1691 = vpop.f32.mrf.mxu0
      %1692 = vdwg.mxu0
      %v1693 = vpack.c.bf16 %v1634, %v1631
      %v1694 = vpack.c.bf16 %v1642, %v1639
      %v1695 = vpack.c.bf16 %v1650, %v1647
      %v1696 = vpack.c.bf16 %v1658, %v1655
      %v1697 = vpack.c.bf16 %v1666, %v1663
      %v1698 = vpack.c.bf16 %v1674, %v1671
      %v1699 = vpack.c.bf16 %v1682, %v1679
      %v1700 = vpack.c.bf16 %v1690, %v1687
      %v1709 = vunpack.c.l.b16 %v1693
      %v1710 = vunpack.c.h.b16 %v1693
      %v1711 = vunpack.c.l.b16 %v1694
      %v1712 = vunpack.c.h.b16 %v1694
      %v1713 = vunpack.c.l.b16 %v1695
      %v1714 = vunpack.c.h.b16 %v1695
      %v1715 = vunpack.c.l.b16 %v1696
      %v1716 = vunpack.c.h.b16 %v1696
      %v1717 = vunpack.c.l.b16 %v1697
      %v1718 = vunpack.c.h.b16 %v1697
      %v1719 = vunpack.c.l.b16 %v1698
      %v1720 = vunpack.c.h.b16 %v1698
      %v1721 = vunpack.c.l.b16 %v1699
      %v1722 = vunpack.c.h.b16 %v1699
      %v1723 = vunpack.c.l.b16 %v1700
      %v1724 = vunpack.c.h.b16 %v1700
      %v1725 = vpack.c.b16 %v1709, %v1709
      %v1726 = vpack.c.b16 %v1710, %v1710
      %v1727 = vpack.c.b16 %v1711, %v1711
      %v1728 = vpack.c.b16 %v1712, %v1712
      %v1729 = vpack.c.b16 %v1713, %v1713
      %v1730 = vpack.c.b16 %v1714, %v1714
      %v1731 = vpack.c.b16 %v1715, %v1715
      %v1732 = vpack.c.b16 %v1716, %v1716
      %v1733 = vpack.c.b16 %v1717, %v1717
      %v1734 = vpack.c.b16 %v1718, %v1718
      %v1735 = vpack.c.b16 %v1719, %v1719
      %v1736 = vpack.c.b16 %v1720, %v1720
      %v1737 = vpack.c.b16 %v1721, %v1721
      %v1738 = vpack.c.b16 %v1722, %v1722
      %v1739 = vpack.c.b16 %v1723, %v1723
      %v1740 = vpack.c.b16 %v1724, %v1724
      %1757 = vst [vmem:[#allocation13] sm:$0xf] %v1725
      %1758 = vst [vmem:[#allocation13 + $0x4] sm:$0xf] %v1726
      %1759 = vst [vmem:[#allocation13 + $0x8] sm:$0xf] %v1727
      %1760 = vst [vmem:[#allocation13 + $0xc] sm:$0xf] %v1728
      %1761 = vst [vmem:[#allocation13 + $0x10] sm:$0xf] %v1729
      %1762 = vst [vmem:[#allocation13 + $0x14] sm:$0xf] %v1730
      %1763 = vst [vmem:[#allocation13 + $0x18] sm:$0xf] %v1731
      %1764 = vst [vmem:[#allocation13 + $0x1c] sm:$0xf] %v1732
      %1765 = vst [vmem:[#allocation13 + $0x20] sm:$0xf] %v1733
      %1766 = vst [vmem:[#allocation13 + $0x24] sm:$0xf] %v1734
      %1767 = vst [vmem:[#allocation13 + $0x28] sm:$0xf] %v1735
      %1768 = vst [vmem:[#allocation13 + $0x2c] sm:$0xf] %v1736
      %1769 = vst [vmem:[#allocation13 + $0x30] sm:$0xf] %v1737
      %1770 = vst [vmem:[#allocation13 + $0x34] sm:$0xf] %v1738
      %1771 = vst [vmem:[#allocation13 + $0x38] sm:$0xf] %v1739
      %1772 = vst [vmem:[#allocation13 + $0x3c] sm:$0xf] %v1740
    $region57: #{tpu_custom_call.1} parent=1 // pred_fallthru
      _
    // Predicated region
    $region58: #{tpu_custom_call.1} parent=1 // pred_check
      _
    $region59: #{tpu_custom_call.1} parent=1 // pred_check_branch
      %1774 = sbr.rel (0) target = $region61
    $region60: #{tpu_custom_call.1} parent=1 // pred_region
      %s1776 = ssub.s32 1024, 1024
      %1777 = vsyncadd [#allocation6], %s1776
      %s1778 = sshll.u32 [#allocation13], 4
      %s1779 = int_to_ptr.vmem [resolvable:$true] %s1778
      %1784 = dma.vmem_to_hbm [thread:$0]  %s1779, 1024, %s7, [#allocation6], 64, 64, 4
    $region61: #{tpu_custom_call.1} parent=1 // pred_fallthru
      _
    // Predicated region
    $region62: #{tpu_custom_call.1} parent=1 // pred_check
      _
    $region63: #{tpu_custom_call.1} parent=1 // pred_check_branch
      %1786 = sbr.rel (0) target = $region65
    $region64: #{tpu_custom_call.1} parent=1 // pred_region
      %1787 = dma.done [#allocation6], 1024
    $region65: #{tpu_custom_call.1} parent=1 // pred_fallthru
      _
    %1788 = vsyncpa [#allocation5], 1
    %1789 = vsyncpa [#allocation8], 1
    %1790 = vsyncpa [#allocation11], 1
    %1791 = vsyncpa [#allocation6], 1

</llo_original>
